<compile_context>
chip_gen: v7x
topology: tpu7x:2x2x1
jax: 0.10.0
libtpu: 0.0.40
codegen_flags: <defaults>
</compile_context>

<pallas_src>
import math
import functools

import jax
import jax.numpy as jnp
from jax import lax
from jax.experimental import pallas as pl
from jax.experimental.pallas import tpu as pltpu

_LANE = 128


def _make_aspp_kernel(TH, W, K, dil, cin, cout_p):
    """Fused dilated-conv + folded-BN + ReLU kernel for one (batch, row-tile) step."""

    def kernel(x_ref, w_ref, scale_ref, bias_ref, o_ref):
        # x_ref:     (1, Hp, Wp, Cin)    padded input image (resident per batch element)
        # w_ref:     (K, K, Cin, Cout_p) bf16 weights, Cout zero-padded to 128-multiple
        # scale_ref: (1, Cout_p)         folded BN scale  (gamma / sqrt(var+eps))
        # bias_ref:  (1, Cout_p)         folded BN bias   (beta - mean*scale)
        # o_ref:     (1, TH, W, Cout_p)  lane-dense output row tile
        h = pl.program_id(1)
        row0 = pl.multiple_of(h * TH, TH)

        acc = jnp.zeros((TH * W, cout_p), jnp.float32)
        for kh in range(K):                                   # K in {1,3}: static unroll
            # One contiguous row-slab read per kh tap; kw offsets are static
            # column slices of the loaded value (3 reads instead of 9 strided
            # window slices from the ref).
            slab = x_ref[0, pl.ds(row0 + kh * dil, TH), :, :]  # (TH, Wp, Cin) bf16
            for kw in range(K):
                patch = slab[:, kw * dil:kw * dil + W, :]      # (TH, W, Cin) bf16
                acc = acc + jnp.dot(
                    patch.reshape(TH * W, cin),
                    w_ref[kh, kw],                             # (Cin, Cout_p) bf16
                    preferred_element_type=jnp.float32,        # f32 accumulate
                )

        # f32 epilogue: fused inference BatchNorm + ReLU, single final cast.
        y = jnp.maximum(acc * scale_ref[0] + bias_ref[0], 0.0)
        o_ref[...] = y.reshape(1, TH, W, cout_p).astype(o_ref.dtype)

    return kernel


def aspp_module_forward(x_nchw, weight_oihw, bn_gamma, bn_beta, bn_mean, bn_var,
                        rate, eps=1e-5):
    """ASPP_module.forward: dilated conv (bias=False) -> BatchNorm2d -> ReLU.

    x_nchw:      (N, Cin, H, W)
    weight_oihw: (Cout, Cin, K, K)   K = 1 if rate == 1 else 3
    returns:     (N, Cout, H, W)
    """
    N, cin, H, W = x_nchw.shape
    cout, _, K, _ = weight_oihw.shape
    if rate == 1:
        padding, dil = 0, 1
    else:
        padding, dil = rate, rate

    cout_p = max(_LANE, ((cout + _LANE - 1) // _LANE) * _LANE)   # lane-dense Cout

    # ---- glue (plain JAX): layout change, spatial pad, BN fold, bf16 cast ----
    x_nhwc = jnp.transpose(x_nchw, (0, 2, 3, 1))                 # NCHW -> NHWC
    x_pad = jnp.pad(x_nhwc, ((0, 0), (padding, padding), (padding, padding), (0, 0)))
    x_pad = x_pad.astype(jnp.bfloat16)
    Hp, Wp = H + 2 * padding, W + 2 * padding

    w_hwio = jnp.transpose(weight_oihw, (2, 3, 1, 0)).astype(jnp.bfloat16)  # OIHW -> HWIO
    w_hwio = jnp.pad(w_hwio, ((0, 0), (0, 0), (0, 0), (0, cout_p - cout)))  # zero Cout pad

    scale = (bn_gamma / jnp.sqrt(bn_var + eps)).astype(jnp.float32)
    bias = (bn_beta - bn_mean * scale).astype(jnp.float32)
    scale_p = jnp.pad(scale, (0, cout_p - cout)).reshape(1, cout_p)
    bias_p = jnp.pad(bias, (0, cout_p - cout)).reshape(1, cout_p)

    TH = 8 if H % 8 == 0 else H                                  # row-tile height
    kernel = _make_aspp_kernel(TH, W, K, dil, cin, cout_p)

    flops = 2 * N * H * W * K * K * cin * cout_p
    bytes_accessed = (x_pad.size * 2 + w_hwio.size * 2
                      + N * H * W * cout_p * 4
                      + (scale_p.size + bias_p.size) * 4)

    out_nhwc = pl.pallas_call(
        kernel,
        out_shape=jax.ShapeDtypeStruct((N, H, W, cout_p), jnp.float32),
        grid_spec=pltpu.PrefetchScalarGridSpec(
            num_scalar_prefetch=0,
            grid=(N, H // TH),
            in_specs=[
                # Whole padded image per batch element; index_map ignores the
                # row axis so it is DMA'd once per batch element and reused.
                pl.BlockSpec((1, Hp, Wp, cin), lambda n, h: (n, 0, 0, 0)),
                pl.BlockSpec((K, K, cin, cout_p), lambda n, h: (0, 0, 0, 0)),
                pl.BlockSpec((1, cout_p), lambda n, h: (0, 0)),
                pl.BlockSpec((1, cout_p), lambda n, h: (0, 0)),
            ],
            out_specs=pl.BlockSpec((1, TH, W, cout_p), lambda n, h: (n, h, 0, 0)),
        ),
        compiler_params=pltpu.CompilerParams(
            dimension_semantics=("parallel", "parallel"),
            vmem_limit_bytes=48 * 1024 * 1024,   # headroom under v7x's 64 MiB physical
        ),
        cost_estimate=pl.CostEstimate(
            flops=flops, transcendentals=0, bytes_accessed=bytes_accessed),
    )(x_pad, w_hwio, scale_p, bias_p)

    out_nhwc = out_nhwc[..., :cout]                              # strip Cout pad
    return jnp.transpose(out_nhwc, (0, 3, 1, 2)).astype(x_nchw.dtype)   # NHWC -> NCHW


def _reference_forward(x_nchw, weight_oihw, bn_gamma, bn_beta, bn_mean, bn_var,
                       rate, eps=1e-5):
    """Pure-JAX reference (lax conv) for correctness checking."""
    if rate == 1:
        padding, dil = 0, 1
    else:
        padding, dil = rate, rate
    y = lax.conv_general_dilated(
        x_nchw.astype(jnp.float32), weight_oihw.astype(jnp.float32),
        window_strides=(1, 1),
        padding=[(padding, padding), (padding, padding)],
        rhs_dilation=(dil, dil),
        dimension_numbers=("NCHW", "OIHW", "NCHW"),
        precision=lax.Precision.HIGHEST,
    )
    scale = (bn_gamma / jnp.sqrt(bn_var + eps)).reshape(1, -1, 1, 1)
    bias = (bn_beta - bn_mean * (bn_gamma / jnp.sqrt(bn_var + eps))).reshape(1, -1, 1, 1)
    return jnp.maximum(y * scale + bias, 0.0)


if __name__ == "__main__":
    key = jax.random.PRNGKey(0)
    k_x, k_w = jax.random.split(key)

    # Module config (synthetic, deterministic).
    in_channels, out_channels, rate = 4, 8, 2   # rate != 1 -> 3x3 dilated conv
    N, H, W = 2, 16, 16
    K = 1 if rate == 1 else 3

    # Input (NCHW, like PyTorch).
    x = jax.random.normal(k_x, (N, in_channels, H, W), dtype=jnp.float32)

    # Conv weight: kaiming_normal_ style init (std = sqrt(2 / fan_in)), bias=False.
    fan_in = in_channels * K * K
    weight = jax.random.normal(k_w, (out_channels, in_channels, K, K),
                               dtype=jnp.float32) * math.sqrt(2.0 / fan_in)

    # BatchNorm2d params as _init_weight leaves them (inference statistics).
    bn_gamma = jnp.ones((out_channels,), jnp.float32)
    bn_beta = jnp.zeros((out_channels,), jnp.float32)
    bn_mean = jnp.zeros((out_channels,), jnp.float32)
    bn_var = jnp.ones((out_channels,), jnp.float32)

    fwd = jax.jit(functools.partial(aspp_module_forward, rate=rate))
    out = fwd(x, weight, bn_gamma, bn_beta, bn_mean, bn_var)
    out = jax.block_until_ready(out)
    assert out.shape == (N, out_channels, H, W)

    # Tight check against a reference with the same bf16-rounded inputs
    # (isolates any kernel bug from intentional bf16 quantization).
    x_bf = x.astype(jnp.bfloat16).astype(jnp.float32)
    w_bf = weight.astype(jnp.bfloat16).astype(jnp.float32)
    ref_bf = _reference_forward(x_bf, w_bf, bn_gamma, bn_beta, bn_mean, bn_var, rate)
    assert jnp.allclose(out, ref_bf, atol=2e-3, rtol=2e-3), "mismatch vs bf16-matched reference"

    # Loose check against the full-f32 reference (covers bf16 input rounding).
    ref_f32 = _reference_forward(x, weight, bn_gamma, bn_beta, bn_mean, bn_var, rate)
    assert jnp.allclose(out, ref_f32, atol=3e-2, rtol=3e-2), "mismatch vs f32 reference"

    print("KERNEL_OK")
</pallas_src>

<mosaic_0001>
module attributes {stable_mosaic.version = 11 : i64} {
  func.func @kernel(%arg0: i32, %arg1: i32, %arg2: memref<1x20x20x4xbf16, #tpu.memory_space<vmem>>, %arg3: memref<3x3x4x128xbf16, #tpu.memory_space<vmem>>, %arg4: memref<1x128xf32, #tpu.memory_space<vmem>>, %arg5: memref<1x128xf32, #tpu.memory_space<vmem>>, %arg6: memref<1x8x16x128xf32, #tpu.memory_space<vmem>>) attributes {dimension_semantics = [#tpu.dimension_semantics<parallel>, #tpu.dimension_semantics<parallel>], iteration_bounds = array<i64: 2, 2>, scalar_prefetch = 0 : i64, scratch_operands = 0 : i64, tpu.core_type = #tpu.core_type<tc>, window_params = [{transform_indices = @transform_0, window_bounds = array<i64: 1, 20, 20, 4>}, {pipeline_mode = #tpu.pipeline_mode<synchronous>, transform_indices = @transform_1, window_bounds = array<i64: 3, 3, 4, 128>}, {pipeline_mode = #tpu.pipeline_mode<synchronous>, transform_indices = @transform_2, window_bounds = array<i64: 1, 128>}, {pipeline_mode = #tpu.pipeline_mode<synchronous>, transform_indices = @transform_3, window_bounds = array<i64: 1, 128>}, {transform_indices = @transform_4, window_bounds = array<i64: 1, 8, 16, 128>}]} {
    %c8_i32 = arith.constant 8 : i32
    %0 = arith.muli %arg1, %c8_i32 : i32
    %1 = tpu.assume_multiple %0, 8 : i32
    %cst = arith.constant 0.000000e+00 : f32
    %2 = vector.broadcast %cst : f32 to vector<128x128xf32>
    %c0_i32 = arith.constant 0 : i32
    %3 = arith.addi %1, %c0_i32 : i32
    %c0 = arith.constant 0 : index
    %4 = arith.index_cast %3 : i32 to index
    %c0_0 = arith.constant 0 : index
    %c0_1 = arith.constant 0 : index
    %5 = vector.load %arg2[%c0, %4, %c0_0, %c0_1] : memref<1x20x20x4xbf16, #tpu.memory_space<vmem>>, vector<1x8x20x4xbf16>
    %6 = vector.shape_cast %5 : vector<1x8x20x4xbf16> to vector<8x20x4xbf16>
    %7 = vector.extract_strided_slice %6 {offsets = [0, 0, 0], sizes = [8, 16, 4], strides = [1, 1, 1]} : vector<8x20x4xbf16> to vector<8x16x4xbf16>
    %8 = vector.shape_cast %7 : vector<8x16x4xbf16> to vector<128x4xbf16>
    %c0_2 = arith.constant 0 : index
    %c0_3 = arith.constant 0 : index
    %c0_4 = arith.constant 0 : index
    %c0_5 = arith.constant 0 : index
    %9 = vector.load %arg3[%c0_2, %c0_3, %c0_4, %c0_5] : memref<3x3x4x128xbf16, #tpu.memory_space<vmem>>, vector<1x1x4x128xbf16>
    %10 = vector.shape_cast %9 : vector<1x1x4x128xbf16> to vector<4x128xbf16>
    %cst_6 = arith.constant dense<0.000000e+00> : vector<128x128xf32>
    %11 = tpu.matmul %8, %10, %cst_6 {dimension_numbers = #tpu.dot_dimension_numbers<[1], [0], [0], [1], [0, 0, 1, 1], [], []>} : vector<128x4xbf16>, vector<4x128xbf16>, vector<128x128xf32> -> vector<128x128xf32>
    %12 = arith.addf %2, %11 : vector<128x128xf32>
    %13 = vector.extract_strided_slice %6 {offsets = [0, 2, 0], sizes = [8, 16, 4], strides = [1, 1, 1]} : vector<8x20x4xbf16> to vector<8x16x4xbf16>
    %14 = vector.shape_cast %13 : vector<8x16x4xbf16> to vector<128x4xbf16>
    %c0_7 = arith.constant 0 : index
    %c1 = arith.constant 1 : index
    %c0_8 = arith.constant 0 : index
    %c0_9 = arith.constant 0 : index
    %15 = vector.load %arg3[%c0_7, %c1, %c0_8, %c0_9] : memref<3x3x4x128xbf16, #tpu.memory_space<vmem>>, vector<1x1x4x128xbf16>
    %16 = vector.shape_cast %15 : vector<1x1x4x128xbf16> to vector<4x128xbf16>
    %cst_10 = arith.constant dense<0.000000e+00> : vector<128x128xf32>
    %17 = tpu.matmul %14, %16, %cst_10 {dimension_numbers = #tpu.dot_dimension_numbers<[1], [0], [0], [1], [0, 0, 1, 1], [], []>} : vector<128x4xbf16>, vector<4x128xbf16>, vector<128x128xf32> -> vector<128x128xf32>
    %18 = arith.addf %12, %17 : vector<128x128xf32>
    %19 = vector.extract_strided_slice %6 {offsets = [0, 4, 0], sizes = [8, 16, 4], strides = [1, 1, 1]} : vector<8x20x4xbf16> to vector<8x16x4xbf16>
    %20 = vector.shape_cast %19 : vector<8x16x4xbf16> to vector<128x4xbf16>
    %c0_11 = arith.constant 0 : index
    %c2 = arith.constant 2 : index
    %c0_12 = arith.constant 0 : index
    %c0_13 = arith.constant 0 : index
    %21 = vector.load %arg3[%c0_11, %c2, %c0_12, %c0_13] : memref<3x3x4x128xbf16, #tpu.memory_space<vmem>>, vector<1x1x4x128xbf16>
    %22 = vector.shape_cast %21 : vector<1x1x4x128xbf16> to vector<4x128xbf16>
    %cst_14 = arith.constant dense<0.000000e+00> : vector<128x128xf32>
    %23 = tpu.matmul %20, %22, %cst_14 {dimension_numbers = #tpu.dot_dimension_numbers<[1], [0], [0], [1], [0, 0, 1, 1], [], []>} : vector<128x4xbf16>, vector<4x128xbf16>, vector<128x128xf32> -> vector<128x128xf32>
    %24 = arith.addf %18, %23 : vector<128x128xf32>
    %c2_i32 = arith.constant 2 : i32
    %25 = arith.addi %1, %c2_i32 : i32
    %c0_15 = arith.constant 0 : index
    %26 = arith.index_cast %25 : i32 to index
    %c0_16 = arith.constant 0 : index
    %c0_17 = arith.constant 0 : index
    %27 = vector.load %arg2[%c0_15, %26, %c0_16, %c0_17] : memref<1x20x20x4xbf16, #tpu.memory_space<vmem>>, vector<1x8x20x4xbf16>
    %28 = vector.shape_cast %27 : vector<1x8x20x4xbf16> to vector<8x20x4xbf16>
    %29 = vector.extract_strided_slice %28 {offsets = [0, 0, 0], sizes = [8, 16, 4], strides = [1, 1, 1]} : vector<8x20x4xbf16> to vector<8x16x4xbf16>
    %30 = vector.shape_cast %29 : vector<8x16x4xbf16> to vector<128x4xbf16>
    %c1_18 = arith.constant 1 : index
    %c0_19 = arith.constant 0 : index
    %c0_20 = arith.constant 0 : index
    %c0_21 = arith.constant 0 : index
    %31 = vector.load %arg3[%c1_18, %c0_19, %c0_20, %c0_21] : memref<3x3x4x128xbf16, #tpu.memory_space<vmem>>, vector<1x1x4x128xbf16>
    %32 = vector.shape_cast %31 : vector<1x1x4x128xbf16> to vector<4x128xbf16>
    %cst_22 = arith.constant dense<0.000000e+00> : vector<128x128xf32>
    %33 = tpu.matmul %30, %32, %cst_22 {dimension_numbers = #tpu.dot_dimension_numbers<[1], [0], [0], [1], [0, 0, 1, 1], [], []>} : vector<128x4xbf16>, vector<4x128xbf16>, vector<128x128xf32> -> vector<128x128xf32>
    %34 = arith.addf %24, %33 : vector<128x128xf32>
    %35 = vector.extract_strided_slice %28 {offsets = [0, 2, 0], sizes = [8, 16, 4], strides = [1, 1, 1]} : vector<8x20x4xbf16> to vector<8x16x4xbf16>
    %36 = vector.shape_cast %35 : vector<8x16x4xbf16> to vector<128x4xbf16>
    %c1_23 = arith.constant 1 : index
    %c1_24 = arith.constant 1 : index
    %c0_25 = arith.constant 0 : index
    %c0_26 = arith.constant 0 : index
    %37 = vector.load %arg3[%c1_23, %c1_24, %c0_25, %c0_26] : memref<3x3x4x128xbf16, #tpu.memory_space<vmem>>, vector<1x1x4x128xbf16>
    %38 = vector.shape_cast %37 : vector<1x1x4x128xbf16> to vector<4x128xbf16>
    %cst_27 = arith.constant dense<0.000000e+00> : vector<128x128xf32>
    %39 = tpu.matmul %36, %38, %cst_27 {dimension_numbers = #tpu.dot_dimension_numbers<[1], [0], [0], [1], [0, 0, 1, 1], [], []>} : vector<128x4xbf16>, vector<4x128xbf16>, vector<128x128xf32> -> vector<128x128xf32>
    %40 = arith.addf %34, %39 : vector<128x128xf32>
    %41 = vector.extract_strided_slice %28 {offsets = [0, 4, 0], sizes = [8, 16, 4], strides = [1, 1, 1]} : vector<8x20x4xbf16> to vector<8x16x4xbf16>
    %42 = vector.shape_cast %41 : vector<8x16x4xbf16> to vector<128x4xbf16>
    %c1_28 = arith.constant 1 : index
    %c2_29 = arith.constant 2 : index
    %c0_30 = arith.constant 0 : index
    %c0_31 = arith.constant 0 : index
    %43 = vector.load %arg3[%c1_28, %c2_29, %c0_30, %c0_31] : memref<3x3x4x128xbf16, #tpu.memory_space<vmem>>, vector<1x1x4x128xbf16>
    %44 = vector.shape_cast %43 : vector<1x1x4x128xbf16> to vector<4x128xbf16>
    %cst_32 = arith.constant dense<0.000000e+00> : vector<128x128xf32>
    %45 = tpu.matmul %42, %44, %cst_32 {dimension_numbers = #tpu.dot_dimension_numbers<[1], [0], [0], [1], [0, 0, 1, 1], [], []>} : vector<128x4xbf16>, vector<4x128xbf16>, vector<128x128xf32> -> vector<128x128xf32>
    %46 = arith.addf %40, %45 : vector<128x128xf32>
    %c4_i32 = arith.constant 4 : i32
    %47 = arith.addi %1, %c4_i32 : i32
    %c0_33 = arith.constant 0 : index
    %48 = arith.index_cast %47 : i32 to index
    %c0_34 = arith.constant 0 : index
    %c0_35 = arith.constant 0 : index
    %49 = vector.load %arg2[%c0_33, %48, %c0_34, %c0_35] : memref<1x20x20x4xbf16, #tpu.memory_space<vmem>>, vector<1x8x20x4xbf16>
    %50 = vector.shape_cast %49 : vector<1x8x20x4xbf16> to vector<8x20x4xbf16>
    %51 = vector.extract_strided_slice %50 {offsets = [0, 0, 0], sizes = [8, 16, 4], strides = [1, 1, 1]} : vector<8x20x4xbf16> to vector<8x16x4xbf16>
    %52 = vector.shape_cast %51 : vector<8x16x4xbf16> to vector<128x4xbf16>
    %c2_36 = arith.constant 2 : index
    %c0_37 = arith.constant 0 : index
    %c0_38 = arith.constant 0 : index
    %c0_39 = arith.constant 0 : index
    %53 = vector.load %arg3[%c2_36, %c0_37, %c0_38, %c0_39] : memref<3x3x4x128xbf16, #tpu.memory_space<vmem>>, vector<1x1x4x128xbf16>
    %54 = vector.shape_cast %53 : vector<1x1x4x128xbf16> to vector<4x128xbf16>
    %cst_40 = arith.constant dense<0.000000e+00> : vector<128x128xf32>
    %55 = tpu.matmul %52, %54, %cst_40 {dimension_numbers = #tpu.dot_dimension_numbers<[1], [0], [0], [1], [0, 0, 1, 1], [], []>} : vector<128x4xbf16>, vector<4x128xbf16>, vector<128x128xf32> -> vector<128x128xf32>
    %56 = arith.addf %46, %55 : vector<128x128xf32>
    %57 = vector.extract_strided_slice %50 {offsets = [0, 2, 0], sizes = [8, 16, 4], strides = [1, 1, 1]} : vector<8x20x4xbf16> to vector<8x16x4xbf16>
    %58 = vector.shape_cast %57 : vector<8x16x4xbf16> to vector<128x4xbf16>
    %c2_41 = arith.constant 2 : index
    %c1_42 = arith.constant 1 : index
    %c0_43 = arith.constant 0 : index
    %c0_44 = arith.constant 0 : index
    %59 = vector.load %arg3[%c2_41, %c1_42, %c0_43, %c0_44] : memref<3x3x4x128xbf16, #tpu.memory_space<vmem>>, vector<1x1x4x128xbf16>
    %60 = vector.shape_cast %59 : vector<1x1x4x128xbf16> to vector<4x128xbf16>
    %cst_45 = arith.constant dense<0.000000e+00> : vector<128x128xf32>
    %61 = tpu.matmul %58, %60, %cst_45 {dimension_numbers = #tpu.dot_dimension_numbers<[1], [0], [0], [1], [0, 0, 1, 1], [], []>} : vector<128x4xbf16>, vector<4x128xbf16>, vector<128x128xf32> -> vector<128x128xf32>
    %62 = arith.addf %56, %61 : vector<128x128xf32>
    %63 = vector.extract_strided_slice %50 {offsets = [0, 4, 0], sizes = [8, 16, 4], strides = [1, 1, 1]} : vector<8x20x4xbf16> to vector<8x16x4xbf16>
    %64 = vector.shape_cast %63 : vector<8x16x4xbf16> to vector<128x4xbf16>
    %c2_46 = arith.constant 2 : index
    %c2_47 = arith.constant 2 : index
    %c0_48 = arith.constant 0 : index
    %c0_49 = arith.constant 0 : index
    %65 = vector.load %arg3[%c2_46, %c2_47, %c0_48, %c0_49] : memref<3x3x4x128xbf16, #tpu.memory_space<vmem>>, vector<1x1x4x128xbf16>
    %66 = vector.shape_cast %65 : vector<1x1x4x128xbf16> to vector<4x128xbf16>
    %cst_50 = arith.constant dense<0.000000e+00> : vector<128x128xf32>
    %67 = tpu.matmul %64, %66, %cst_50 {dimension_numbers = #tpu.dot_dimension_numbers<[1], [0], [0], [1], [0, 0, 1, 1], [], []>} : vector<128x4xbf16>, vector<4x128xbf16>, vector<128x128xf32> -> vector<128x128xf32>
    %68 = arith.addf %62, %67 : vector<128x128xf32>
    %c0_51 = arith.constant 0 : index
    %c0_52 = arith.constant 0 : index
    %69 = vector.load %arg4[%c0_51, %c0_52] : memref<1x128xf32, #tpu.memory_space<vmem>>, vector<1x128xf32>
    %70 = vector.shape_cast %69 : vector<1x128xf32> to vector<128xf32>
    %71 = vector.shape_cast %70 : vector<128xf32> to vector<1x128xf32>
    %72 = vector.broadcast %71 : vector<1x128xf32> to vector<128x128xf32>
    %73 = arith.mulf %68, %72 : vector<128x128xf32>
    %c0_53 = arith.constant 0 : index
    %c0_54 = arith.constant 0 : index
    %74 = vector.load %arg5[%c0_53, %c0_54] : memref<1x128xf32, #tpu.memory_space<vmem>>, vector<1x128xf32>
    %75 = vector.shape_cast %74 : vector<1x128xf32> to vector<128xf32>
    %76 = vector.shape_cast %75 : vector<128xf32> to vector<1x128xf32>
    %77 = vector.broadcast %76 : vector<1x128xf32> to vector<128x128xf32>
    %78 = arith.addf %73, %77 : vector<128x128xf32>
    %cst_55 = arith.constant 0.000000e+00 : f32
    %79 = vector.broadcast %cst_55 : f32 to vector<128x128xf32>
    %80 = arith.maximumf %78, %79 : vector<128x128xf32>
    %81 = vector.shape_cast %80 : vector<128x128xf32> to vector<1x8x16x128xf32>
    %c0_56 = arith.constant 0 : index
    %c0_57 = arith.constant 0 : index
    %c0_58 = arith.constant 0 : index
    %c0_59 = arith.constant 0 : index
    %82 = vector.load %arg6[%c0_56, %c0_57, %c0_58, %c0_59] : memref<1x8x16x128xf32, #tpu.memory_space<vmem>>, vector<1x8x16x128xf32>
    tpu.vector_store %arg6[%c0_56, %c0_57, %c0_58, %c0_59], %81 {strides = array<i32>} : memref<1x8x16x128xf32, #tpu.memory_space<vmem>>, vector<1x8x16x128xf32>,
    return
  }
  func.func @transform_0(%arg0: i32, %arg1: i32) -> (i32, i32, i32, i32) {
    %c0_i32 = arith.constant 0 : i32
    %c0_i32_0 = arith.constant 0 : i32
    %c0_i32_1 = arith.constant 0 : i32
    %c0_i32_2 = arith.constant 0 : i32
    return %arg0, %c0_i32, %c0_i32_0, %c0_i32_1 : i32, i32, i32, i32
  }
  func.func @transform_1(%arg0: i32, %arg1: i32) -> (i32, i32, i32, i32) {
    %c0_i32 = arith.constant 0 : i32
    %c0_i32_0 = arith.constant 0 : i32
    %c0_i32_1 = arith.constant 0 : i32
    %c0_i32_2 = arith.constant 0 : i32
    %c0_i32_3 = arith.constant 0 : i32
    return %c0_i32, %c0_i32_0, %c0_i32_1, %c0_i32_2 : i32, i32, i32, i32
  }
  func.func @transform_2(%arg0: i32, %arg1: i32) -> (i32, i32) {
    %c0_i32 = arith.constant 0 : i32
    %c0_i32_0 = arith.constant 0 : i32
    %c0_i32_1 = arith.constant 0 : i32
    return %c0_i32, %c0_i32_0 : i32, i32
  }
  func.func @transform_3(%arg0: i32, %arg1: i32) -> (i32, i32) {
    %c0_i32 = arith.constant 0 : i32
    %c0_i32_0 = arith.constant 0 : i32
    %c0_i32_1 = arith.constant 0 : i32
    return %c0_i32, %c0_i32_0 : i32, i32
  }
  func.func @transform_4(%arg0: i32, %arg1: i32) -> (i32, i32, i32, i32) {
    %c0_i32 = arith.constant 0 : i32
    %c0_i32_0 = arith.constant 0 : i32
    %c0_i32_1 = arith.constant 0 : i32
    return %arg0, %arg1, %c0_i32, %c0_i32_0 : i32, i32, i32, i32
  }
}

</mosaic_0001>

<llo_original>
// kernel: aspp_module_forward.1
$region0: #{aspp_module_forward.1}
  #allocation0 [shape = 'u32[]', space=smem, size = 0x4, offset = 0x4, fixed_abs, tag = 'smem constant byte address 0x4 - core index']
  #allocation1 [shape = 'u32[144,128]{1,0:T(1,128)}', space=vmem, size = 0x12000, scoped, tag = 'internal scratch']
  %s0 = inlined_call_operand.vmem [shape: bf16[2,20,20,4], index: 0, kind: input, shape index: {}]
  %s1 = inlined_call_operand.vmem [shape: bf16[3,3,4,128], index: 1, kind: input, shape index: {}]
  %s2 = inlined_call_operand.vmem [shape: f32[1,128], index: 2, kind: input, shape index: {}]
  %s3 = inlined_call_operand.vmem [shape: f32[1,128], index: 3, kind: input, shape index: {}]
  %s4 = inlined_call_operand.vmem [shape: f32[2,16,16,128], index: 4, kind: output, shape index: {}]
  %s5 = sld [smem:[#allocation0]]
  $region49: #{aspp_module_forward.1} parent=0
    _
  %s7 = ssub.s32 1, %s5
  %s8 = scalar_select 0, %s7, %s5
  loop: start=0, step=1, limit=6
  $region2: #{aspp_module_forward.1} parent=0 // loop_pre_header
    _
  $region3: #{aspp_module_forward.1} parent=0 // loop_header
    %s10 = sphi 0, %s14
    %p11 = scmp.ge.s32.totalorder %s10, 6
    %s17 = sphi 0, %s29
    %s18 = sphi 0, %s25
    %s19 = sphi 0, %s17
    %s20 = sphi 0, %s18
    %s21 = sphi 0, %s19
    %s22 = sphi 0, %s20
    %s32 = sphi 0, %s34
    %s35 = sphi 0, %s32
    %s36 = sphi 0, %s35
    %s52 = sphi 0, %s36
    %s56 = sphi 0, %s56
    %s58 = sphi 0, %s56
    %s59 = sphi 0, %s58
    %s73 = sphi 0, %s59
    %s77 = sphi 0, %s77
    %s79 = sphi 0, %s77
    %s80 = sphi 0, %s79
    %s94 = sphi 0, %s80
    %s98 = sphi 0, %s98
    %s100 = sphi 0, %s98
    %s101 = sphi 0, %s100
    %s115 = sphi 0, %s101
    %s123 = sphi 0, %s125
    %s126 = sphi 0, %s123
    %s127 = sphi 0, %s126
    %s143 = sphi 0, %s127
  $region4: #{aspp_module_forward.1} parent=0 // loop_header_branch
    %13 = sbr.rel (%p11) target = $region8
  $region5: #{aspp_module_forward.1} parent=0 // loop_body
    %s15 = ssub.s32 %s10, 1
    %s16 = ssub.s32 %s10, 2
    %s23 = sadd.s32 1, %s18
    %p24 = scmp.ge.s32.totalorder %s23, 2
    %s25 = scalar_select %p24, 0, %s23
    %s26 = sadd.s32 1, %s17
    %s27 = scalar_select %p24, %s26, %s17
    %p28 = scmp.ge.s32.totalorder %s27, 2
    %s29 = scalar_select %p28, 0, %s27
    %s30 = ssub.s32 %s17, %s29
    %p31 = scmp.eq.s32.totalorder %s30, 0
    %s33 = sadd.s32 %s32, 1
    %s34 = scalar_select %p31, %s32, %s33
    %p37 = pneg %p31
    %p38 = scmp.eq.s32.totalorder %s10, 3
    %p39 = por %p37, %p38
    %p40 = scmp.ne.s32.totalorder %s32, %s35
    %p41 = scmp.eq.s32.totalorder %s10, 0
    %p42 = por %p40, %p41
    %p43 = scmp.ne.s32.totalorder %s32, %s35
    %p44 = scmp.eq.s32.totalorder %s15, 3
    %p45 = por %p43, %p44
    %p46 = scmp.ne.s32.totalorder %s35, %s36
    %p47 = scmp.eq.s32.totalorder %s15, 0
    %p48 = por %p46, %p47
    %p49 = scmp.ne.s32.totalorder %s35, %s36
    %p50 = scmp.eq.s32.totalorder %s16, 3
    %p51 = por %p49, %p50
    %p53 = scmp.ne.s32.totalorder %s36, %s52
    %p54 = scmp.eq.s32.totalorder %s16, 0
    %p55 = por %p53, %p54
    %s57 = sadd.s32 %s56, 1
    %p60 = scmp.eq.s32.totalorder %s10, 3
    %p61 = scmp.ne.s32.totalorder %s56, %s58
    %p62 = scmp.eq.s32.totalorder %s10, 0
    %p63 = por %p61, %p62
    %p64 = scmp.ne.s32.totalorder %s56, %s58
    %p65 = scmp.eq.s32.totalorder %s15, 3
    %p66 = por %p64, %p65
    %p67 = scmp.ne.s32.totalorder %s58, %s59
    %p68 = scmp.eq.s32.totalorder %s15, 0
    %p69 = por %p67, %p68
    %p70 = scmp.ne.s32.totalorder %s58, %s59
    %p71 = scmp.eq.s32.totalorder %s16, 3
    %p72 = por %p70, %p71
    %p74 = scmp.ne.s32.totalorder %s59, %s73
    %p75 = scmp.eq.s32.totalorder %s16, 0
    %p76 = por %p74, %p75
    %s78 = sadd.s32 %s77, 1
    %p81 = scmp.eq.s32.totalorder %s10, 3
    %p82 = scmp.ne.s32.totalorder %s77, %s79
    %p83 = scmp.eq.s32.totalorder %s10, 0
    %p84 = por %p82, %p83
    %p85 = scmp.ne.s32.totalorder %s77, %s79
    %p86 = scmp.eq.s32.totalorder %s15, 3
    %p87 = por %p85, %p86
    %p88 = scmp.ne.s32.totalorder %s79, %s80
    %p89 = scmp.eq.s32.totalorder %s15, 0
    %p90 = por %p88, %p89
    %p91 = scmp.ne.s32.totalorder %s79, %s80
    %p92 = scmp.eq.s32.totalorder %s16, 3
    %p93 = por %p91, %p92
    %p95 = scmp.ne.s32.totalorder %s80, %s94
    %p96 = scmp.eq.s32.totalorder %s16, 0
    %p97 = por %p95, %p96
    %s99 = sadd.s32 %s98, 1
    %p102 = scmp.eq.s32.totalorder %s10, 3
    %p103 = scmp.ne.s32.totalorder %s98, %s100
    %p104 = scmp.eq.s32.totalorder %s10, 0
    %p105 = por %p103, %p104
    %p106 = scmp.ne.s32.totalorder %s98, %s100
    %p107 = scmp.eq.s32.totalorder %s15, 3
    %p108 = por %p106, %p107
    %p109 = scmp.ne.s32.totalorder %s100, %s101
    %p110 = scmp.eq.s32.totalorder %s15, 0
    %p111 = por %p109, %p110
    %p112 = scmp.ne.s32.totalorder %s100, %s101
    %p113 = scmp.eq.s32.totalorder %s16, 3
    %p114 = por %p112, %p113
    %p116 = scmp.ne.s32.totalorder %s101, %s115
    %p117 = scmp.eq.s32.totalorder %s16, 0
    %p118 = por %p116, %p117
    %s119 = ssub.s32 %s17, %s29
    %s120 = ssub.s32 %s18, %s25
    %s121 = sor.u32 %s119, %s120
    %p122 = scmp.eq.s32.totalorder %s121, 0
    %s124 = sadd.s32 %s123, 1
    %s125 = scalar_select %p122, %s123, %s124
    %p128 = pneg %p122
    %p129 = scmp.eq.s32.totalorder %s10, 3
    %p130 = por %p128, %p129
    %p131 = scmp.ne.s32.totalorder %s123, %s126
    %p132 = scmp.eq.s32.totalorder %s10, 0
    %p133 = por %p131, %p132
    %p134 = scmp.ne.s32.totalorder %s123, %s126
    %p135 = scmp.eq.s32.totalorder %s15, 3
    %p136 = por %p134, %p135
    %p137 = scmp.ne.s32.totalorder %s126, %s127
    %p138 = scmp.eq.s32.totalorder %s15, 0
    %p139 = por %p137, %p138
    %p140 = scmp.ne.s32.totalorder %s126, %s127
    %p141 = scmp.eq.s32.totalorder %s16, 3
    %p142 = por %p140, %p141
    %p144 = scmp.ne.s32.totalorder %s127, %s143
    %p145 = scmp.eq.s32.totalorder %s16, 0
    %p146 = por %p144, %p145
    %p147 = scmp.le.s32.totalorder 1, %s10
    %p148 = scmp.lt.s32.totalorder %s10, 5
    %p149 = pnand %p147, %p148
    %p150 = pneg %p149
    // Predicated region
    $region9: #{aspp_module_forward.1} parent=5 // pred_check
      _
    $region10: #{aspp_module_forward.1} parent=5 // pred_check_branch
      %152 = sbr.rel (%p149) target = $region12
    $region11: #{aspp_module_forward.1} parent=5 // pred_region
      %s153 = ssub.s32 %s10, 1
      // Predicated region
      $region13: #{aspp_module_forward.1} parent=11 // pred_check
        %p154 = pneg %p69
      $region14: #{aspp_module_forward.1} parent=11 // pred_check_branch
        %156 = sbr.rel (%p154) target = $region16
      $region15: #{aspp_module_forward.1} parent=11 // pred_region
        _
      $region16: #{aspp_module_forward.1} parent=11 // pred_fallthru
        _
      // Predicated region
      $region17: #{aspp_module_forward.1} parent=11 // pred_check
        %p157 = pneg %p90
      $region18: #{aspp_module_forward.1} parent=11 // pred_check_branch
        %159 = sbr.rel (%p157) target = $region20
      $region19: #{aspp_module_forward.1} parent=11 // pred_region
        _
      $region20: #{aspp_module_forward.1} parent=11 // pred_fallthru
        _
      // Predicated region
      $region21: #{aspp_module_forward.1} parent=11 // pred_check
        %p160 = pneg %p111
      $region22: #{aspp_module_forward.1} parent=11 // pred_check_branch
        %162 = sbr.rel (%p160) target = $region24
      $region23: #{aspp_module_forward.1} parent=11 // pred_region
        _
      $region24: #{aspp_module_forward.1} parent=11 // pred_fallthru
        _
    $region12: #{aspp_module_forward.1} parent=5 // pred_fallthru
      _
    %p163 = scmp.lt.s32.totalorder %s10, 4
    // Predicated region
    $region25: #{aspp_module_forward.1} parent=5 // pred_check
      %p164 = pneg %p163
    $region26: #{aspp_module_forward.1} parent=5 // pred_check_branch
      %166 = sbr.rel (%p164) target = $region28
    $region27: #{aspp_module_forward.1} parent=5 // pred_region
      // Predicated region
      $region29: #{aspp_module_forward.1} parent=27 // pred_check
        %p167 = pneg %p42
      $region30: #{aspp_module_forward.1} parent=27 // pred_check_branch
        %169 = sbr.rel (%p167) target = $region32
      $region31: #{aspp_module_forward.1} parent=27 // pred_region
        %p170 = scmp.lt.s32.totalorder %s17, 1
        %s171 = scalar_select %p170, %s17, 1
        %s172 = smul.addr %s171, 60
        %s173 = smul.addr %s172, 4
        %s174 = scalar_lea.vmem %s0, %s173
      $region32: #{aspp_module_forward.1} parent=27 // pred_fallthru
        _
    $region28: #{aspp_module_forward.1} parent=5 // pred_fallthru
      _
    %p175 = scmp.le.s32.totalorder 1, %s10
    %p176 = scmp.lt.s32.totalorder %s10, 5
    %p177 = pnand %p175, %p176
    %p178 = pneg %p177
    // Predicated region
    $region33: #{aspp_module_forward.1} parent=5 // pred_check
      _
    $region34: #{aspp_module_forward.1} parent=5 // pred_check_branch
      %180 = sbr.rel (%p177) target = $region36
    $region35: #{aspp_module_forward.1} parent=5 // pred_region
      %s181 = ssub.s32 %s10, 1
      %p182 = scmp.lt.s32.totalorder %s19, 1
      %s183 = scalar_select %p182, %s19, 1
      %s184 = smul.addr %s183, 60
      %s185 = smul.addr %s184, 4
      %s186 = scalar_lea.vmem %s0, %s185
      %p187 = pneg %p48
      %p188 = pneg %p45
      %p189 = pneg %p69
      %p190 = pneg %p66
      %p191 = pneg %p90
      %p192 = pneg %p87
      %p193 = pneg %p111
      %p194 = pneg %p108
      %p195 = pneg %p139
      %p196 = pneg %p136
      %s197 = smul.u32 8, %s20
      %p198 = scmp.lt.s32.totalorder %s19, 1
      %s199 = scalar_select %p198, %s19, 1
      %p200 = scmp.lt.s32.totalorder %s197, 15
      %s201 = scalar_select %p200, %s197, 15
      %s202 = smul.addr %s201, 2
      %s203 = smul.addr %s199, 32
      %s204 = sadd.s32 %s202, %s203
      %s205 = smul.addr %s204, 8
      %s206 = scalar_lea.vmem %s4, %s205
      %p207 = scmp.lt.s32.totalorder %s19, 1
      %s208 = scalar_select %p207, %s19, 1
      %s209 = smul.addr %s208, 60
      %s210 = smul.addr %s209, 4
      %s211 = scalar_lea.vmem %s0, %s210
      %s212 = smul.u32 8, %s20
      %p213 = scmp.lt.s32.totalorder %s19, 1
      %s214 = scalar_select %p213, %s19, 1
      %p215 = scmp.lt.s32.totalorder %s212, 15
      %s216 = scalar_select %p215, %s212, 15
      %s217 = smul.addr %s216, 2
      %s218 = smul.addr %s214, 32
      %s219 = sadd.s32 %s217, %s218
      %s220 = smul.addr %s219, 8
      %s221 = scalar_lea.vmem %s4, %s220
      %s222 = smul.u32 8, %s20
      %s224 = smul.u32 %s20, 8
      %s225 = smul.u32 %s224, 3
      %s226 = smul.addr %s225, 4
      %s227 = scalar_lea.vmem %s211, %s226
      %v228 = vld [vmem:[%s227] sm:$0xf]
      %v229 = vld [vmem:[%s227 + $0x4] sm:$0xf]
      %v230 = vld [vmem:[%s227 + $0x8] sm:$0x3]
      %v231 = vld [vmem:[%s227 + $0xc] sm:$0xf]
      %v232 = vld [vmem:[%s227 + $0x10] sm:$0xf]
      %v233 = vld [vmem:[%s227 + $0x14] sm:$0x3]
      %v234 = vld [vmem:[%s227 + $0x18] sm:$0xf]
      %v235 = vld [vmem:[%s227 + $0x1c] sm:$0xf]
      %v236 = vld [vmem:[%s227 + $0x20] sm:$0x3]
      %v237 = vld [vmem:[%s227 + $0x24] sm:$0xf]
      %v238 = vld [vmem:[%s227 + $0x28] sm:$0xf]
      %v239 = vld [vmem:[%s227 + $0x2c] sm:$0x3]
      %v240 = vld [vmem:[%s227 + $0x30] sm:$0xf]
      %v241 = vld [vmem:[%s227 + $0x34] sm:$0xf]
      %v242 = vld [vmem:[%s227 + $0x38] sm:$0x3]
      %v243 = vld [vmem:[%s227 + $0x3c] sm:$0xf]
      %v244 = vld [vmem:[%s227 + $0x40] sm:$0xf]
      %v245 = vld [vmem:[%s227 + $0x44] sm:$0x3]
      %v246 = vld [vmem:[%s227 + $0x48] sm:$0xf]
      %v247 = vld [vmem:[%s227 + $0x4c] sm:$0xf]
      %v248 = vld [vmem:[%s227 + $0x50] sm:$0x3]
      %v249 = vld [vmem:[%s227 + $0x54] sm:$0xf]
      %v250 = vld [vmem:[%s227 + $0x58] sm:$0xf]
      %v251 = vld [vmem:[%s227 + $0x5c] sm:$0x3]
      %v252 = vld [vmem:[%s1] sm:$0x3]
      %vm277 = vcmask 1042432
      %vm278 = vcmask 1046532
      %vm279 = vmor %vm277, %vm278
      %v280 = vrot.slane %v228, 5
      %v281 = vrot.slane %v280, 4
      %v282 = vrot.slane %v229, 5
      %v283 = vsel %vm279, %v281, %v282
      %v284 = vrot.slane %v282, 4
      %v285 = vrot.slane %v230, 5
      %v286 = vsel %vm279, %v284, %v285
      %v287 = vrot.slane %v231, 5
      %v288 = vrot.slane %v287, 4
      %v289 = vrot.slane %v232, 5
      %v290 = vsel %vm279, %v288, %v289
      %v291 = vrot.slane %v289, 4
      %v292 = vrot.slane %v233, 5
      %v293 = vsel %vm279, %v291, %v292
      %v294 = vrot.slane %v234, 5
      %v295 = vrot.slane %v294, 4
      %v296 = vrot.slane %v235, 5
      %v297 = vsel %vm279, %v295, %v296
      %v298 = vrot.slane %v296, 4
      %v299 = vrot.slane %v236, 5
      %v300 = vsel %vm279, %v298, %v299
      %v301 = vrot.slane %v237, 5
      %v302 = vrot.slane %v301, 4
      %v303 = vrot.slane %v238, 5
      %v304 = vsel %vm279, %v302, %v303
      %v305 = vrot.slane %v303, 4
      %v306 = vrot.slane %v239, 5
      %v307 = vsel %vm279, %v305, %v306
      %v308 = vrot.slane %v240, 5
      %v309 = vrot.slane %v308, 4
      %v310 = vrot.slane %v241, 5
      %v311 = vsel %vm279, %v309, %v310
      %v312 = vrot.slane %v310, 4
      %v313 = vrot.slane %v242, 5
      %v314 = vsel %vm279, %v312, %v313
      %v315 = vrot.slane %v243, 5
      %v316 = vrot.slane %v315, 4
      %v317 = vrot.slane %v244, 5
      %v318 = vsel %vm279, %v316, %v317
      %v319 = vrot.slane %v317, 4
      %v320 = vrot.slane %v245, 5
      %v321 = vsel %vm279, %v319, %v320
      %v322 = vrot.slane %v246, 5
      %v323 = vrot.slane %v322, 4
      %v324 = vrot.slane %v247, 5
      %v325 = vsel %vm279, %v323, %v324
      %v326 = vrot.slane %v324, 4
      %v327 = vrot.slane %v248, 5
      %v328 = vsel %vm279, %v326, %v327
      %v329 = vrot.slane %v249, 5
      %v330 = vrot.slane %v329, 4
      %v331 = vrot.slane %v250, 5
      %v332 = vsel %vm279, %v330, %v331
      %v333 = vrot.slane %v331, 4
      %v334 = vrot.slane %v251, 5
      %v335 = vsel %vm279, %v333, %v334
      %s336 = scalar_lea.vmem %s1, 2
      %v337 = vld [vmem:[%s336] sm:$0x3]
      %v338 = vunpack.c.l.b16 %v283
      %v339 = vunpack.c.l.b16 %v286
      %v340 = vunpack.c.l.b16 %v290
      %v341 = vunpack.c.l.b16 %v293
      %v342 = vunpack.c.l.b16 %v297
      %v343 = vunpack.c.l.b16 %v300
      %v344 = vunpack.c.l.b16 %v304
      %v345 = vunpack.c.l.b16 %v307
      %v346 = vunpack.c.l.b16 %v311
      %v347 = vunpack.c.l.b16 %v314
      %v348 = vunpack.c.l.b16 %v318
      %v349 = vunpack.c.l.b16 %v321
      %v350 = vunpack.c.l.b16 %v325
      %v351 = vunpack.c.l.b16 %v328
      %v352 = vunpack.c.l.b16 %v332
      %v353 = vunpack.c.l.b16 %v335
      %v354 = vpack.c.b16 %v339, %v338
      %v355 = vpack.c.b16 %v341, %v340
      %v356 = vpack.c.b16 %v343, %v342
      %v357 = vpack.c.b16 %v345, %v344
      %v358 = vpack.c.b16 %v347, %v346
      %v359 = vpack.c.b16 %v349, %v348
      %v360 = vpack.c.b16 %v351, %v350
      %v361 = vpack.c.b16 %v353, %v352
      %vm362 = vcmask 31744
      %v364 = vsel %vm362, %v354, 0
      %v367 = vsel %vm362, %v355, 0
      %v370 = vsel %vm362, %v356, 0
      %v373 = vsel %vm362, %v357, 0
      %v376 = vsel %vm362, %v358, 0
      %v379 = vsel %vm362, %v359, 0
      %v382 = vsel %vm362, %v360, 0
      %v385 = vsel %vm362, %v361, 0
      %vm387 = vcmask 1041408
      %v389 = vsel %vm387, %v337, 0
      %391 = vmatprep.subr.bf16.mxu0 0
      %392 = vmatpush1.bf16.msra.mxu0 %v389
      %393 = vmatprep.subr.bf16.mxu0 0
      %394 = vmatpush1.bf16.msra.mxu0 0
      %395 = vmatprep.subr.bf16.mxu0 0
      %396 = vmatpush1.bf16.msra.mxu0 0
      %397 = vmatprep.subr.bf16.mxu0 0
      %398 = vmatpush1.bf16.msra.mxu0 0
      %399 = vmatprep.subr.bf16.mxu0 0
      %400 = vmatpush1.bf16.msra.mxu0 0
      %401 = vmatprep.subr.bf16.mxu0 0
      %402 = vmatpush1.bf16.msra.mxu0 0
      %403 = vmatprep.subr.bf16.mxu0 0
      %404 = vmatpush1.bf16.msra.mxu0 0
      %405 = vmatprep.subr.bf16.mxu0 0
      %406 = vmatpush1.bf16.msra.mxu0 0
      %407 = vmatprep.subr.bf16.mxu0 0
      %408 = vmatpush1.bf16.msra.mxu0 0
      %409 = vmatprep.subr.bf16.mxu0 0
      %410 = vmatpush1.bf16.msra.mxu0 0
      %411 = vmatprep.subr.bf16.mxu0 0
      %412 = vmatpush1.bf16.msra.mxu0 0
      %413 = vmatprep.subr.bf16.mxu0 0
      %414 = vmatpush1.bf16.msra.mxu0 0
      %415 = vmatprep.subr.bf16.mxu0 0
      %416 = vmatpush1.bf16.msra.mxu0 0
      %417 = vmatprep.subr.bf16.mxu0 0
      %418 = vmatpush1.bf16.msra.mxu0 0
      %419 = vmatprep.subr.bf16.mxu0 0
      %420 = vmatpush1.bf16.msra.mxu0 0
      %421 = vmatprep.subr.bf16.mxu0 0
      %422 = vmatpush1.bf16.msra.mxu0 0
      %423 = vmatprep.mubr.bf16.mxu0 0
      %424 = vmatmul.mubr.bf16.gmra.mrb[0].mxu0 %v364
      %v425 = vpop.f32.mrb[0].mxu0
      %v426 = vadd.f32 0.0, %v425
      %v427 = vpop.f32.mrb[0].mxu0
      %v428 = vpop.f32.mrb[0].mxu0
      %v429 = vadd.f32 0.0, %v428
      %v430 = vpop.f32.mrb[0].mxu0
      %431 = vmatprep.mubr.bf16.mxu0 0
      %432 = vmatmul.mubr.bf16.gmra.mrb[0].mxu0 %v367
      %v433 = vpop.f32.mrb[0].mxu0
      %v434 = vadd.f32 0.0, %v433
      %v435 = vpop.f32.mrb[0].mxu0
      %v436 = vpop.f32.mrb[0].mxu0
      %v437 = vadd.f32 0.0, %v436
      %v438 = vpop.f32.mrb[0].mxu0
      %439 = vmatprep.mubr.bf16.mxu0 0
      %440 = vmatmul.mubr.bf16.gmra.mrb[0].mxu0 %v370
      %v441 = vpop.f32.mrb[0].mxu0
      %v442 = vadd.f32 0.0, %v441
      %v443 = vpop.f32.mrb[0].mxu0
      %v444 = vpop.f32.mrb[0].mxu0
      %v445 = vadd.f32 0.0, %v444
      %v446 = vpop.f32.mrb[0].mxu0
      %447 = vmatprep.mubr.bf16.mxu0 0
      %448 = vmatmul.mubr.bf16.gmra.mrb[0].mxu0 %v373
      %v449 = vpop.f32.mrb[0].mxu0
      %v450 = vadd.f32 0.0, %v449
      %v451 = vpop.f32.mrb[0].mxu0
      %v452 = vpop.f32.mrb[0].mxu0
      %v453 = vadd.f32 0.0, %v452
      %v454 = vpop.f32.mrb[0].mxu0
      %455 = vmatprep.mubr.bf16.mxu0 0
      %456 = vmatmul.mubr.bf16.gmra.mrb[0].mxu0 %v376
      %v457 = vpop.f32.mrb[0].mxu0
      %v458 = vadd.f32 0.0, %v457
      %v459 = vpop.f32.mrb[0].mxu0
      %v460 = vpop.f32.mrb[0].mxu0
      %v461 = vadd.f32 0.0, %v460
      %v462 = vpop.f32.mrb[0].mxu0
      %463 = vmatprep.mubr.bf16.mxu0 0
      %464 = vmatmul.mubr.bf16.gmra.mrb[0].mxu0 %v379
      %v465 = vpop.f32.mrb[0].mxu0
      %v466 = vadd.f32 0.0, %v465
      %v467 = vpop.f32.mrb[0].mxu0
      %v468 = vpop.f32.mrb[0].mxu0
      %v469 = vadd.f32 0.0, %v468
      %v470 = vpop.f32.mrb[0].mxu0
      %471 = vmatprep.mubr.bf16.mxu0 0
      %472 = vmatmul.mubr.bf16.gmra.mrb[0].mxu0 %v382
      %v473 = vpop.f32.mrb[0].mxu0
      %v474 = vadd.f32 0.0, %v473
      %v475 = vpop.f32.mrb[0].mxu0
      %v476 = vpop.f32.mrb[0].mxu0
      %v477 = vadd.f32 0.0, %v476
      %v478 = vpop.f32.mrb[0].mxu0
      %479 = vmatprep.mubr.bf16.mxu0 0
      %480 = vmatmul.mubr.bf16.gmra.mrb[0].mxu0 %v385
      %v481 = vpop.f32.mrb[0].mxu0
      %v482 = vadd.f32 0.0, %v481
      %v483 = vpop.f32.mrb[0].mxu0
      %v484 = vpop.f32.mrb[0].mxu0
      %v485 = vadd.f32 0.0, %v484
      %v486 = vpop.f32.mrb[0].mxu0
      %487 = vdwg.mxu0
      %v488 = vunpack.c.l.b16 %v228
      %v489 = vunpack.c.l.b16 %v229
      %v490 = vunpack.c.l.b16 %v231
      %v491 = vunpack.c.l.b16 %v232
      %v492 = vunpack.c.l.b16 %v234
      %v493 = vunpack.c.l.b16 %v235
      %v494 = vunpack.c.l.b16 %v237
      %v495 = vunpack.c.l.b16 %v238
      %v496 = vunpack.c.l.b16 %v240
      %v497 = vunpack.c.l.b16 %v241
      %v498 = vunpack.c.l.b16 %v243
      %v499 = vunpack.c.l.b16 %v244
      %v500 = vunpack.c.l.b16 %v246
      %v501 = vunpack.c.l.b16 %v247
      %v502 = vunpack.c.l.b16 %v249
      %v503 = vunpack.c.l.b16 %v250
      %v504 = vpack.c.b16 %v489, %v488
      %v505 = vpack.c.b16 %v491, %v490
      %v506 = vpack.c.b16 %v493, %v492
      %v507 = vpack.c.b16 %v495, %v494
      %v508 = vpack.c.b16 %v497, %v496
      %v509 = vpack.c.b16 %v499, %v498
      %v510 = vpack.c.b16 %v501, %v500
      %v511 = vpack.c.b16 %v503, %v502
      %v513 = vsel %vm362, %v504, 0
      %v516 = vsel %vm362, %v505, 0
      %v519 = vsel %vm362, %v506, 0
      %v522 = vsel %vm362, %v507, 0
      %v525 = vsel %vm362, %v508, 0
      %v528 = vsel %vm362, %v509, 0
      %v531 = vsel %vm362, %v510, 0
      %v534 = vsel %vm362, %v511, 0
      %v537 = vsel %vm387, %v252, 0
      %539 = vmatprep.subr.bf16.mxu0 0
      %540 = vmatpush1.bf16.msra.mxu0 %v537
      %541 = vmatprep.subr.bf16.mxu0 0
      %542 = vmatpush1.bf16.msra.mxu0 0
      %543 = vmatprep.subr.bf16.mxu0 0
      %544 = vmatpush1.bf16.msra.mxu0 0
      %545 = vmatprep.subr.bf16.mxu0 0
      %546 = vmatpush1.bf16.msra.mxu0 0
      %547 = vmatprep.subr.bf16.mxu0 0
      %548 = vmatpush1.bf16.msra.mxu0 0
      %549 = vmatprep.subr.bf16.mxu0 0
      %550 = vmatpush1.bf16.msra.mxu0 0
      %551 = vmatprep.subr.bf16.mxu0 0
      %552 = vmatpush1.bf16.msra.mxu0 0
      %553 = vmatprep.subr.bf16.mxu0 0
      %554 = vmatpush1.bf16.msra.mxu0 0
      %555 = vmatprep.subr.bf16.mxu0 0
      %556 = vmatpush1.bf16.msra.mxu0 0
      %557 = vmatprep.subr.bf16.mxu0 0
      %558 = vmatpush1.bf16.msra.mxu0 0
      %559 = vmatprep.subr.bf16.mxu0 0
      %560 = vmatpush1.bf16.msra.mxu0 0
      %561 = vmatprep.subr.bf16.mxu0 0
      %562 = vmatpush1.bf16.msra.mxu0 0
      %563 = vmatprep.subr.bf16.mxu0 0
      %564 = vmatpush1.bf16.msra.mxu0 0
      %565 = vmatprep.subr.bf16.mxu0 0
      %566 = vmatpush1.bf16.msra.mxu0 0
      %567 = vmatprep.subr.bf16.mxu0 0
      %568 = vmatpush1.bf16.msra.mxu0 0
      %569 = vmatprep.subr.bf16.mxu0 0
      %570 = vmatpush1.bf16.msra.mxu0 0
      %571 = vmatprep.mubr.bf16.mxu0 0
      %572 = vmatmul.mubr.bf16.gmra.mrb[0].mxu0 %v513
      %v573 = vpop.f32.mrb[0].mxu0
      %v574 = vadd.f32 %v426, %v573
      %v575 = vpop.f32.mrb[0].mxu0
      %v576 = vpop.f32.mrb[0].mxu0
      %v577 = vadd.f32 %v429, %v576
      %v578 = vpop.f32.mrb[0].mxu0
      %579 = vmatprep.mubr.bf16.mxu0 0
      %580 = vmatmul.mubr.bf16.gmra.mrb[0].mxu0 %v516
      %v581 = vpop.f32.mrb[0].mxu0
      %v582 = vadd.f32 %v434, %v581
      %v583 = vpop.f32.mrb[0].mxu0
      %v584 = vpop.f32.mrb[0].mxu0
      %v585 = vadd.f32 %v437, %v584
      %v586 = vpop.f32.mrb[0].mxu0
      %587 = vmatprep.mubr.bf16.mxu0 0
      %588 = vmatmul.mubr.bf16.gmra.mrb[0].mxu0 %v519
      %v589 = vpop.f32.mrb[0].mxu0
      %v590 = vadd.f32 %v442, %v589
      %v591 = vpop.f32.mrb[0].mxu0
      %v592 = vpop.f32.mrb[0].mxu0
      %v593 = vadd.f32 %v445, %v592
      %v594 = vpop.f32.mrb[0].mxu0
      %595 = vmatprep.mubr.bf16.mxu0 0
      %596 = vmatmul.mubr.bf16.gmra.mrb[0].mxu0 %v522
      %v597 = vpop.f32.mrb[0].mxu0
      %v598 = vadd.f32 %v450, %v597
      %v599 = vpop.f32.mrb[0].mxu0
      %v600 = vpop.f32.mrb[0].mxu0
      %v601 = vadd.f32 %v453, %v600
      %v602 = vpop.f32.mrb[0].mxu0
      %603 = vmatprep.mubr.bf16.mxu0 0
      %604 = vmatmul.mubr.bf16.gmra.mrb[0].mxu0 %v525
      %v605 = vpop.f32.mrb[0].mxu0
      %v606 = vadd.f32 %v458, %v605
      %v607 = vpop.f32.mrb[0].mxu0
      %v608 = vpop.f32.mrb[0].mxu0
      %v609 = vadd.f32 %v461, %v608
      %v610 = vpop.f32.mrb[0].mxu0
      %611 = vmatprep.mubr.bf16.mxu0 0
      %612 = vmatmul.mubr.bf16.gmra.mrb[0].mxu0 %v528
      %v613 = vpop.f32.mrb[0].mxu0
      %v614 = vadd.f32 %v466, %v613
      %v615 = vpop.f32.mrb[0].mxu0
      %v616 = vpop.f32.mrb[0].mxu0
      %v617 = vadd.f32 %v469, %v616
      %v618 = vpop.f32.mrb[0].mxu0
      %619 = vmatprep.mubr.bf16.mxu0 0
      %620 = vmatmul.mubr.bf16.gmra.mrb[0].mxu0 %v531
      %v621 = vpop.f32.mrb[0].mxu0
      %v622 = vadd.f32 %v474, %v621
      %v623 = vpop.f32.mrb[0].mxu0
      %v624 = vpop.f32.mrb[0].mxu0
      %v625 = vadd.f32 %v477, %v624
      %v626 = vpop.f32.mrb[0].mxu0
      %627 = vmatprep.mubr.bf16.mxu0 0
      %628 = vmatmul.mubr.bf16.gmra.mrb[0].mxu0 %v534
      %v629 = vpop.f32.mrb[0].mxu0
      %v630 = vadd.f32 %v482, %v629
      %v631 = vpop.f32.mrb[0].mxu0
      %v632 = vpop.f32.mrb[0].mxu0
      %v633 = vadd.f32 %v485, %v632
      %v634 = vpop.f32.mrb[0].mxu0
      %635 = vdwg.mxu0
      %vm636 = vcmask 1041408
      %vm637 = vcmask 1045508
      %vm638 = vmor %vm636, %vm637
      %v639 = vrot.slane %v228, 6
      %v640 = vrot.slane %v639, 4
      %v641 = vrot.slane %v229, 6
      %v642 = vsel %vm638, %v640, %v641
      %v643 = vrot.slane %v641, 4
      %v644 = vrot.slane %v230, 6
      %v645 = vsel %vm638, %v643, %v644
      %v646 = vrot.slane %v231, 6
      %v647 = vrot.slane %v646, 4
      %v648 = vrot.slane %v232, 6
      %v649 = vsel %vm638, %v647, %v648
      %v650 = vrot.slane %v648, 4
      %v651 = vrot.slane %v233, 6
      %v652 = vsel %vm638, %v650, %v651
      %v653 = vrot.slane %v234, 6
      %v654 = vrot.slane %v653, 4
      %v655 = vrot.slane %v235, 6
      %v656 = vsel %vm638, %v654, %v655
      %v657 = vrot.slane %v655, 4
      %v658 = vrot.slane %v236, 6
      %v659 = vsel %vm638, %v657, %v658
      %v660 = vrot.slane %v237, 6
      %v661 = vrot.slane %v660, 4
      %v662 = vrot.slane %v238, 6
      %v663 = vsel %vm638, %v661, %v662
      %v664 = vrot.slane %v662, 4
      %v665 = vrot.slane %v239, 6
      %v666 = vsel %vm638, %v664, %v665
      %v667 = vrot.slane %v240, 6
      %v668 = vrot.slane %v667, 4
      %v669 = vrot.slane %v241, 6
      %v670 = vsel %vm638, %v668, %v669
      %v671 = vrot.slane %v669, 4
      %v672 = vrot.slane %v242, 6
      %v673 = vsel %vm638, %v671, %v672
      %v674 = vrot.slane %v243, 6
      %v675 = vrot.slane %v674, 4
      %v676 = vrot.slane %v244, 6
      %v677 = vsel %vm638, %v675, %v676
      %v678 = vrot.slane %v676, 4
      %v679 = vrot.slane %v245, 6
      %v680 = vsel %vm638, %v678, %v679
      %v681 = vrot.slane %v246, 6
      %v682 = vrot.slane %v681, 4
      %v683 = vrot.slane %v247, 6
      %v684 = vsel %vm638, %v682, %v683
      %v685 = vrot.slane %v683, 4
      %v686 = vrot.slane %v248, 6
      %v687 = vsel %vm638, %v685, %v686
      %v688 = vrot.slane %v249, 6
      %v689 = vrot.slane %v688, 4
      %v690 = vrot.slane %v250, 6
      %v691 = vsel %vm638, %v689, %v690
      %v692 = vrot.slane %v690, 4
      %v693 = vrot.slane %v251, 6
      %v694 = vsel %vm638, %v692, %v693
      %s695 = scalar_lea.vmem %s1, 4
      %v696 = vld [vmem:[%s695] sm:$0x3]
      %v697 = vunpack.c.l.b16 %v642
      %v698 = vunpack.c.l.b16 %v645
      %v699 = vunpack.c.l.b16 %v649
      %v700 = vunpack.c.l.b16 %v652
      %v701 = vunpack.c.l.b16 %v656
      %v702 = vunpack.c.l.b16 %v659
      %v703 = vunpack.c.l.b16 %v663
      %v704 = vunpack.c.l.b16 %v666
      %v705 = vunpack.c.l.b16 %v670
      %v706 = vunpack.c.l.b16 %v673
      %v707 = vunpack.c.l.b16 %v677
      %v708 = vunpack.c.l.b16 %v680
      %v709 = vunpack.c.l.b16 %v684
      %v710 = vunpack.c.l.b16 %v687
      %v711 = vunpack.c.l.b16 %v691
      %v712 = vunpack.c.l.b16 %v694
      %v713 = vpack.c.b16 %v698, %v697
      %v714 = vpack.c.b16 %v700, %v699
      %v715 = vpack.c.b16 %v702, %v701
      %v716 = vpack.c.b16 %v704, %v703
      %v717 = vpack.c.b16 %v706, %v705
      %v718 = vpack.c.b16 %v708, %v707
      %v719 = vpack.c.b16 %v710, %v709
      %v720 = vpack.c.b16 %v712, %v711
      %v722 = vsel %vm362, %v713, 0
      %v725 = vsel %vm362, %v714, 0
      %v728 = vsel %vm362, %v715, 0
      %v731 = vsel %vm362, %v716, 0
      %v734 = vsel %vm362, %v717, 0
      %v737 = vsel %vm362, %v718, 0
      %v740 = vsel %vm362, %v719, 0
      %v743 = vsel %vm362, %v720, 0
      %v746 = vsel %vm387, %v696, 0
      %748 = vmatprep.subr.bf16.mxu0 0
      %749 = vmatpush1.bf16.msra.mxu0 %v746
      %750 = vmatprep.subr.bf16.mxu0 0
      %751 = vmatpush1.bf16.msra.mxu0 0
      %752 = vmatprep.subr.bf16.mxu0 0
      %753 = vmatpush1.bf16.msra.mxu0 0
      %754 = vmatprep.subr.bf16.mxu0 0
      %755 = vmatpush1.bf16.msra.mxu0 0
      %756 = vmatprep.subr.bf16.mxu0 0
      %757 = vmatpush1.bf16.msra.mxu0 0
      %758 = vmatprep.subr.bf16.mxu0 0
      %759 = vmatpush1.bf16.msra.mxu0 0
      %760 = vmatprep.subr.bf16.mxu0 0
      %761 = vmatpush1.bf16.msra.mxu0 0
      %762 = vmatprep.subr.bf16.mxu0 0
      %763 = vmatpush1.bf16.msra.mxu0 0
      %764 = vmatprep.subr.bf16.mxu0 0
      %765 = vmatpush1.bf16.msra.mxu0 0
      %766 = vmatprep.subr.bf16.mxu0 0
      %767 = vmatpush1.bf16.msra.mxu0 0
      %768 = vmatprep.subr.bf16.mxu0 0
      %769 = vmatpush1.bf16.msra.mxu0 0
      %770 = vmatprep.subr.bf16.mxu0 0
      %771 = vmatpush1.bf16.msra.mxu0 0
      %772 = vmatprep.subr.bf16.mxu0 0
      %773 = vmatpush1.bf16.msra.mxu0 0
      %774 = vmatprep.subr.bf16.mxu0 0
      %775 = vmatpush1.bf16.msra.mxu0 0
      %776 = vmatprep.subr.bf16.mxu0 0
      %777 = vmatpush1.bf16.msra.mxu0 0
      %778 = vmatprep.subr.bf16.mxu0 0
      %779 = vmatpush1.bf16.msra.mxu0 0
      %780 = vmatprep.mubr.bf16.mxu0 0
      %781 = vmatmul.mubr.bf16.gmra.mrb[0].mxu0 %v722
      %v782 = vpop.f32.mrb[0].mxu0
      %v783 = vadd.f32 0.0, %v782
      %v784 = vpop.f32.mrb[0].mxu0
      %v785 = vpop.f32.mrb[0].mxu0
      %v786 = vadd.f32 0.0, %v785
      %v787 = vpop.f32.mrb[0].mxu0
      %788 = vmatprep.mubr.bf16.mxu0 0
      %789 = vmatmul.mubr.bf16.gmra.mrb[0].mxu0 %v725
      %v790 = vpop.f32.mrb[0].mxu0
      %v791 = vadd.f32 0.0, %v790
      %v792 = vpop.f32.mrb[0].mxu0
      %v793 = vpop.f32.mrb[0].mxu0
      %v794 = vadd.f32 0.0, %v793
      %v795 = vpop.f32.mrb[0].mxu0
      %796 = vmatprep.mubr.bf16.mxu0 0
      %797 = vmatmul.mubr.bf16.gmra.mrb[0].mxu0 %v728
      %v798 = vpop.f32.mrb[0].mxu0
      %v799 = vadd.f32 0.0, %v798
      %v800 = vpop.f32.mrb[0].mxu0
      %v801 = vpop.f32.mrb[0].mxu0
      %v802 = vadd.f32 0.0, %v801
      %v803 = vpop.f32.mrb[0].mxu0
      %804 = vmatprep.mubr.bf16.mxu0 0
      %805 = vmatmul.mubr.bf16.gmra.mrb[0].mxu0 %v731
      %v806 = vpop.f32.mrb[0].mxu0
      %v807 = vadd.f32 0.0, %v806
      %v808 = vpop.f32.mrb[0].mxu0
      %v809 = vpop.f32.mrb[0].mxu0
      %v810 = vadd.f32 0.0, %v809
      %v811 = vpop.f32.mrb[0].mxu0
      %812 = vmatprep.mubr.bf16.mxu0 0
      %813 = vmatmul.mubr.bf16.gmra.mrb[0].mxu0 %v734
      %v814 = vpop.f32.mrb[0].mxu0
      %v815 = vadd.f32 0.0, %v814
      %v816 = vpop.f32.mrb[0].mxu0
      %v817 = vpop.f32.mrb[0].mxu0
      %v818 = vadd.f32 0.0, %v817
      %v819 = vpop.f32.mrb[0].mxu0
      %820 = vmatprep.mubr.bf16.mxu0 0
      %821 = vmatmul.mubr.bf16.gmra.mrb[0].mxu0 %v737
      %v822 = vpop.f32.mrb[0].mxu0
      %v823 = vadd.f32 0.0, %v822
      %v824 = vpop.f32.mrb[0].mxu0
      %v825 = vpop.f32.mrb[0].mxu0
      %v826 = vadd.f32 0.0, %v825
      %v827 = vpop.f32.mrb[0].mxu0
      %828 = vmatprep.mubr.bf16.mxu0 0
      %829 = vmatmul.mubr.bf16.gmra.mrb[0].mxu0 %v740
      %v830 = vpop.f32.mrb[0].mxu0
      %v831 = vadd.f32 0.0, %v830
      %v832 = vpop.f32.mrb[0].mxu0
      %v833 = vpop.f32.mrb[0].mxu0
      %v834 = vadd.f32 0.0, %v833
      %v835 = vpop.f32.mrb[0].mxu0
      %836 = vmatprep.mubr.bf16.mxu0 0
      %837 = vmatmul.mubr.bf16.gmra.mrb[0].mxu0 %v743
      %v838 = vpop.f32.mrb[0].mxu0
      %v839 = vadd.f32 0.0, %v838
      %v840 = vpop.f32.mrb[0].mxu0
      %v841 = vpop.f32.mrb[0].mxu0
      %v842 = vadd.f32 0.0, %v841
      %v843 = vpop.f32.mrb[0].mxu0
      %844 = vdwg.mxu0
      %v845 = vadd.f32 %v574, %v783
      %v846 = vadd.f32 %v577, %v786
      %v847 = vadd.f32 %v582, %v791
      %v848 = vadd.f32 %v585, %v794
      %v849 = vadd.f32 %v590, %v799
      %v850 = vadd.f32 %v593, %v802
      %v851 = vadd.f32 %v598, %v807
      %v852 = vadd.f32 %v601, %v810
      %v853 = vadd.f32 %v606, %v815
      %v854 = vadd.f32 %v609, %v818
      %v855 = vadd.f32 %v614, %v823
      %v856 = vadd.f32 %v617, %v826
      %v857 = vadd.f32 %v622, %v831
      %v858 = vadd.f32 %v625, %v834
      %v859 = vadd.f32 %v630, %v839
      %v860 = vadd.f32 %v633, %v842
      %s861 = sadd.s32 %s224, 2
      %s862 = smul.u32 %s861, 3
      %s863 = smul.addr %s862, 4
      %s864 = scalar_lea.vmem %s211, %s863
      %v865 = vld [vmem:[%s864] sm:$0xf]
      %v866 = vld [vmem:[%s864 + $0x4] sm:$0xf]
      %v867 = vld [vmem:[%s864 + $0x8] sm:$0x3]
      %v868 = vld [vmem:[%s864 + $0xc] sm:$0xf]
      %v869 = vld [vmem:[%s864 + $0x10] sm:$0xf]
      %v870 = vld [vmem:[%s864 + $0x14] sm:$0x3]
      %v871 = vld [vmem:[%s864 + $0x18] sm:$0xf]
      %v872 = vld [vmem:[%s864 + $0x1c] sm:$0xf]
      %v873 = vld [vmem:[%s864 + $0x20] sm:$0x3]
      %v874 = vld [vmem:[%s864 + $0x24] sm:$0xf]
      %v875 = vld [vmem:[%s864 + $0x28] sm:$0xf]
      %v876 = vld [vmem:[%s864 + $0x2c] sm:$0x3]
      %v877 = vld [vmem:[%s864 + $0x30] sm:$0xf]
      %v878 = vld [vmem:[%s864 + $0x34] sm:$0xf]
      %v879 = vld [vmem:[%s864 + $0x38] sm:$0x3]
      %v880 = vld [vmem:[%s864 + $0x3c] sm:$0xf]
      %v881 = vld [vmem:[%s864 + $0x40] sm:$0xf]
      %v882 = vld [vmem:[%s864 + $0x44] sm:$0x3]
      %v883 = vld [vmem:[%s864 + $0x48] sm:$0xf]
      %v884 = vld [vmem:[%s864 + $0x4c] sm:$0xf]
      %v885 = vld [vmem:[%s864 + $0x50] sm:$0x3]
      %v886 = vld [vmem:[%s864 + $0x54] sm:$0xf]
      %v887 = vld [vmem:[%s864 + $0x58] sm:$0xf]
      %v888 = vld [vmem:[%s864 + $0x5c] sm:$0x3]
      %s889 = scalar_lea.vmem %s1, 6
      %v890 = vld [vmem:[%s889] sm:$0x3]
      %v907 = vunpack.c.l.b16 %v865
      %v908 = vunpack.c.l.b16 %v866
      %v909 = vunpack.c.l.b16 %v868
      %v910 = vunpack.c.l.b16 %v869
      %v911 = vunpack.c.l.b16 %v871
      %v912 = vunpack.c.l.b16 %v872
      %v913 = vunpack.c.l.b16 %v874
      %v914 = vunpack.c.l.b16 %v875
      %v915 = vunpack.c.l.b16 %v877
      %v916 = vunpack.c.l.b16 %v878
      %v917 = vunpack.c.l.b16 %v880
      %v918 = vunpack.c.l.b16 %v881
      %v919 = vunpack.c.l.b16 %v883
      %v920 = vunpack.c.l.b16 %v884
      %v921 = vunpack.c.l.b16 %v886
      %v922 = vunpack.c.l.b16 %v887
      %v923 = vpack.c.b16 %v908, %v907
      %v924 = vpack.c.b16 %v910, %v909
      %v925 = vpack.c.b16 %v912, %v911
      %v926 = vpack.c.b16 %v914, %v913
      %v927 = vpack.c.b16 %v916, %v915
      %v928 = vpack.c.b16 %v918, %v917
      %v929 = vpack.c.b16 %v920, %v919
      %v930 = vpack.c.b16 %v922, %v921
      %v932 = vsel %vm362, %v923, 0
      %v935 = vsel %vm362, %v924, 0
      %v938 = vsel %vm362, %v925, 0
      %v941 = vsel %vm362, %v926, 0
      %v944 = vsel %vm362, %v927, 0
      %v947 = vsel %vm362, %v928, 0
      %v950 = vsel %vm362, %v929, 0
      %v953 = vsel %vm362, %v930, 0
      %v956 = vsel %vm387, %v890, 0
      %958 = vmatprep.subr.bf16.mxu0 0
      %959 = vmatpush1.bf16.msra.mxu0 %v956
      %960 = vmatprep.subr.bf16.mxu0 0
      %961 = vmatpush1.bf16.msra.mxu0 0
      %962 = vmatprep.subr.bf16.mxu0 0
      %963 = vmatpush1.bf16.msra.mxu0 0
      %964 = vmatprep.subr.bf16.mxu0 0
      %965 = vmatpush1.bf16.msra.mxu0 0
      %966 = vmatprep.subr.bf16.mxu0 0
      %967 = vmatpush1.bf16.msra.mxu0 0
      %968 = vmatprep.subr.bf16.mxu0 0
      %969 = vmatpush1.bf16.msra.mxu0 0
      %970 = vmatprep.subr.bf16.mxu0 0
      %971 = vmatpush1.bf16.msra.mxu0 0
      %972 = vmatprep.subr.bf16.mxu0 0
      %973 = vmatpush1.bf16.msra.mxu0 0
      %974 = vmatprep.subr.bf16.mxu0 0
      %975 = vmatpush1.bf16.msra.mxu0 0
      %976 = vmatprep.subr.bf16.mxu0 0
      %977 = vmatpush1.bf16.msra.mxu0 0
      %978 = vmatprep.subr.bf16.mxu0 0
      %979 = vmatpush1.bf16.msra.mxu0 0
      %980 = vmatprep.subr.bf16.mxu0 0
      %981 = vmatpush1.bf16.msra.mxu0 0
      %982 = vmatprep.subr.bf16.mxu0 0
      %983 = vmatpush1.bf16.msra.mxu0 0
      %984 = vmatprep.subr.bf16.mxu0 0
      %985 = vmatpush1.bf16.msra.mxu0 0
      %986 = vmatprep.subr.bf16.mxu0 0
      %987 = vmatpush1.bf16.msra.mxu0 0
      %988 = vmatprep.subr.bf16.mxu0 0
      %989 = vmatpush1.bf16.msra.mxu0 0
      %990 = vmatprep.mubr.bf16.mxu0 0
      %991 = vmatmul.mubr.bf16.gmra.mrb[0].mxu0 %v932
      %v992 = vpop.f32.mrb[0].mxu0
      %v993 = vadd.f32 0.0, %v992
      %v994 = vpop.f32.mrb[0].mxu0
      %v995 = vpop.f32.mrb[0].mxu0
      %v996 = vadd.f32 0.0, %v995
      %v997 = vpop.f32.mrb[0].mxu0
      %998 = vmatprep.mubr.bf16.mxu0 0
      %999 = vmatmul.mubr.bf16.gmra.mrb[0].mxu0 %v935
      %v1000 = vpop.f32.mrb[0].mxu0
      %v1001 = vadd.f32 0.0, %v1000
      %v1002 = vpop.f32.mrb[0].mxu0
      %v1003 = vpop.f32.mrb[0].mxu0
      %v1004 = vadd.f32 0.0, %v1003
      %v1005 = vpop.f32.mrb[0].mxu0
      %1006 = vmatprep.mubr.bf16.mxu0 0
      %1007 = vmatmul.mubr.bf16.gmra.mrb[0].mxu0 %v938
      %v1008 = vpop.f32.mrb[0].mxu0
      %v1009 = vadd.f32 0.0, %v1008
      %v1010 = vpop.f32.mrb[0].mxu0
      %v1011 = vpop.f32.mrb[0].mxu0
      %v1012 = vadd.f32 0.0, %v1011
      %v1013 = vpop.f32.mrb[0].mxu0
      %1014 = vmatprep.mubr.bf16.mxu0 0
      %1015 = vmatmul.mubr.bf16.gmra.mrb[0].mxu0 %v941
      %v1016 = vpop.f32.mrb[0].mxu0
      %v1017 = vadd.f32 0.0, %v1016
      %v1018 = vpop.f32.mrb[0].mxu0
      %v1019 = vpop.f32.mrb[0].mxu0
      %v1020 = vadd.f32 0.0, %v1019
      %v1021 = vpop.f32.mrb[0].mxu0
      %1022 = vmatprep.mubr.bf16.mxu0 0
      %1023 = vmatmul.mubr.bf16.gmra.mrb[0].mxu0 %v944
      %v1024 = vpop.f32.mrb[0].mxu0
      %v1025 = vadd.f32 0.0, %v1024
      %v1026 = vpop.f32.mrb[0].mxu0
      %v1027 = vpop.f32.mrb[0].mxu0
      %v1028 = vadd.f32 0.0, %v1027
      %v1029 = vpop.f32.mrb[0].mxu0
      %1030 = vmatprep.mubr.bf16.mxu0 0
      %1031 = vmatmul.mubr.bf16.gmra.mrb[0].mxu0 %v947
      %v1032 = vpop.f32.mrb[0].mxu0
      %v1033 = vadd.f32 0.0, %v1032
      %v1034 = vpop.f32.mrb[0].mxu0
      %v1035 = vpop.f32.mrb[0].mxu0
      %v1036 = vadd.f32 0.0, %v1035
      %v1037 = vpop.f32.mrb[0].mxu0
      %1038 = vmatprep.mubr.bf16.mxu0 0
      %1039 = vmatmul.mubr.bf16.gmra.mrb[0].mxu0 %v950
      %v1040 = vpop.f32.mrb[0].mxu0
      %v1041 = vadd.f32 0.0, %v1040
      %v1042 = vpop.f32.mrb[0].mxu0
      %v1043 = vpop.f32.mrb[0].mxu0
      %v1044 = vadd.f32 0.0, %v1043
      %v1045 = vpop.f32.mrb[0].mxu0
      %1046 = vmatprep.mubr.bf16.mxu0 0
      %1047 = vmatmul.mubr.bf16.gmra.mrb[0].mxu0 %v953
      %v1048 = vpop.f32.mrb[0].mxu0
      %v1049 = vadd.f32 0.0, %v1048
      %v1050 = vpop.f32.mrb[0].mxu0
      %v1051 = vpop.f32.mrb[0].mxu0
      %v1052 = vadd.f32 0.0, %v1051
      %v1053 = vpop.f32.mrb[0].mxu0
      %1054 = vdwg.mxu0
      %v1055 = vadd.f32 %v845, %v993
      %v1056 = vadd.f32 %v846, %v996
      %v1057 = vadd.f32 %v847, %v1001
      %v1058 = vadd.f32 %v848, %v1004
      %v1059 = vadd.f32 %v849, %v1009
      %v1060 = vadd.f32 %v850, %v1012
      %v1061 = vadd.f32 %v851, %v1017
      %v1062 = vadd.f32 %v852, %v1020
      %v1063 = vadd.f32 %v853, %v1025
      %v1064 = vadd.f32 %v854, %v1028
      %v1065 = vadd.f32 %v855, %v1033
      %v1066 = vadd.f32 %v856, %v1036
      %v1067 = vadd.f32 %v857, %v1041
      %v1068 = vadd.f32 %v858, %v1044
      %v1069 = vadd.f32 %v859, %v1049
      %v1070 = vadd.f32 %v860, %v1052
      %v1079 = vrot.slane %v865, 5
      %v1080 = vrot.slane %v1079, 4
      %v1081 = vrot.slane %v866, 5
      %v1082 = vsel %vm279, %v1080, %v1081
      %v1083 = vrot.slane %v1081, 4
      %v1084 = vrot.slane %v867, 5
      %v1085 = vsel %vm279, %v1083, %v1084
      %v1086 = vrot.slane %v868, 5
      %v1087 = vrot.slane %v1086, 4
      %v1088 = vrot.slane %v869, 5
      %v1089 = vsel %vm279, %v1087, %v1088
      %v1090 = vrot.slane %v1088, 4
      %v1091 = vrot.slane %v870, 5
      %v1092 = vsel %vm279, %v1090, %v1091
      %v1093 = vrot.slane %v871, 5
      %v1094 = vrot.slane %v1093, 4
      %v1095 = vrot.slane %v872, 5
      %v1096 = vsel %vm279, %v1094, %v1095
      %v1097 = vrot.slane %v1095, 4
      %v1098 = vrot.slane %v873, 5
      %v1099 = vsel %vm279, %v1097, %v1098
      %v1100 = vrot.slane %v874, 5
      %v1101 = vrot.slane %v1100, 4
      %v1102 = vrot.slane %v875, 5
      %v1103 = vsel %vm279, %v1101, %v1102
      %v1104 = vrot.slane %v1102, 4
      %v1105 = vrot.slane %v876, 5
      %v1106 = vsel %vm279, %v1104, %v1105
      %v1107 = vrot.slane %v877, 5
      %v1108 = vrot.slane %v1107, 4
      %v1109 = vrot.slane %v878, 5
      %v1110 = vsel %vm279, %v1108, %v1109
      %v1111 = vrot.slane %v1109, 4
      %v1112 = vrot.slane %v879, 5
      %v1113 = vsel %vm279, %v1111, %v1112
      %v1114 = vrot.slane %v880, 5
      %v1115 = vrot.slane %v1114, 4
      %v1116 = vrot.slane %v881, 5
      %v1117 = vsel %vm279, %v1115, %v1116
      %v1118 = vrot.slane %v1116, 4
      %v1119 = vrot.slane %v882, 5
      %v1120 = vsel %vm279, %v1118, %v1119
      %v1121 = vrot.slane %v883, 5
      %v1122 = vrot.slane %v1121, 4
      %v1123 = vrot.slane %v884, 5
      %v1124 = vsel %vm279, %v1122, %v1123
      %v1125 = vrot.slane %v1123, 4
      %v1126 = vrot.slane %v885, 5
      %v1127 = vsel %vm279, %v1125, %v1126
      %v1128 = vrot.slane %v886, 5
      %v1129 = vrot.slane %v1128, 4
      %v1130 = vrot.slane %v887, 5
      %v1131 = vsel %vm279, %v1129, %v1130
      %v1132 = vrot.slane %v1130, 4
      %v1133 = vrot.slane %v888, 5
      %v1134 = vsel %vm279, %v1132, %v1133
      %s1135 = scalar_lea.vmem %s1, 8
      %v1136 = vld [vmem:[%s1135] sm:$0x3]
      %v1137 = vunpack.c.l.b16 %v1082
      %v1138 = vunpack.c.l.b16 %v1085
      %v1139 = vunpack.c.l.b16 %v1089
      %v1140 = vunpack.c.l.b16 %v1092
      %v1141 = vunpack.c.l.b16 %v1096
      %v1142 = vunpack.c.l.b16 %v1099
      %v1143 = vunpack.c.l.b16 %v1103
      %v1144 = vunpack.c.l.b16 %v1106
      %v1145 = vunpack.c.l.b16 %v1110
      %v1146 = vunpack.c.l.b16 %v1113
      %v1147 = vunpack.c.l.b16 %v1117
      %v1148 = vunpack.c.l.b16 %v1120
      %v1149 = vunpack.c.l.b16 %v1124
      %v1150 = vunpack.c.l.b16 %v1127
      %v1151 = vunpack.c.l.b16 %v1131
      %v1152 = vunpack.c.l.b16 %v1134
      %v1153 = vpack.c.b16 %v1138, %v1137
      %v1154 = vpack.c.b16 %v1140, %v1139
      %v1155 = vpack.c.b16 %v1142, %v1141
      %v1156 = vpack.c.b16 %v1144, %v1143
      %v1157 = vpack.c.b16 %v1146, %v1145
      %v1158 = vpack.c.b16 %v1148, %v1147
      %v1159 = vpack.c.b16 %v1150, %v1149
      %v1160 = vpack.c.b16 %v1152, %v1151
      %v1162 = vsel %vm362, %v1153, 0
      %v1165 = vsel %vm362, %v1154, 0
      %v1168 = vsel %vm362, %v1155, 0
      %v1171 = vsel %vm362, %v1156, 0
      %v1174 = vsel %vm362, %v1157, 0
      %v1177 = vsel %vm362, %v1158, 0
      %v1180 = vsel %vm362, %v1159, 0
      %v1183 = vsel %vm362, %v1160, 0
      %v1186 = vsel %vm387, %v1136, 0
      %1188 = vmatprep.subr.bf16.mxu0 0
      %1189 = vmatpush1.bf16.msra.mxu0 %v1186
      %1190 = vmatprep.subr.bf16.mxu0 0
      %1191 = vmatpush1.bf16.msra.mxu0 0
      %1192 = vmatprep.subr.bf16.mxu0 0
      %1193 = vmatpush1.bf16.msra.mxu0 0
      %1194 = vmatprep.subr.bf16.mxu0 0
      %1195 = vmatpush1.bf16.msra.mxu0 0
      %1196 = vmatprep.subr.bf16.mxu0 0
      %1197 = vmatpush1.bf16.msra.mxu0 0
      %1198 = vmatprep.subr.bf16.mxu0 0
      %1199 = vmatpush1.bf16.msra.mxu0 0
      %1200 = vmatprep.subr.bf16.mxu0 0
      %1201 = vmatpush1.bf16.msra.mxu0 0
      %1202 = vmatprep.subr.bf16.mxu0 0
      %1203 = vmatpush1.bf16.msra.mxu0 0
      %1204 = vmatprep.subr.bf16.mxu0 0
      %1205 = vmatpush1.bf16.msra.mxu0 0
      %1206 = vmatprep.subr.bf16.mxu0 0
      %1207 = vmatpush1.bf16.msra.mxu0 0
      %1208 = vmatprep.subr.bf16.mxu0 0
      %1209 = vmatpush1.bf16.msra.mxu0 0
      %1210 = vmatprep.subr.bf16.mxu0 0
      %1211 = vmatpush1.bf16.msra.mxu0 0
      %1212 = vmatprep.subr.bf16.mxu0 0
      %1213 = vmatpush1.bf16.msra.mxu0 0
      %1214 = vmatprep.subr.bf16.mxu0 0
      %1215 = vmatpush1.bf16.msra.mxu0 0
      %1216 = vmatprep.subr.bf16.mxu0 0
      %1217 = vmatpush1.bf16.msra.mxu0 0
      %1218 = vmatprep.subr.bf16.mxu0 0
      %1219 = vmatpush1.bf16.msra.mxu0 0
      %1220 = vmatprep.mubr.bf16.mxu0 0
      %1221 = vmatmul.mubr.bf16.gmra.mrb[0].mxu0 %v1162
      %v1222 = vpop.f32.mrb[0].mxu0
      %v1223 = vadd.f32 0.0, %v1222
      %v1224 = vpop.f32.mrb[0].mxu0
      %v1225 = vpop.f32.mrb[0].mxu0
      %v1226 = vadd.f32 0.0, %v1225
      %v1227 = vpop.f32.mrb[0].mxu0
      %1228 = vmatprep.mubr.bf16.mxu0 0
      %1229 = vmatmul.mubr.bf16.gmra.mrb[0].mxu0 %v1165
      %v1230 = vpop.f32.mrb[0].mxu0
      %v1231 = vadd.f32 0.0, %v1230
      %v1232 = vpop.f32.mrb[0].mxu0
      %v1233 = vpop.f32.mrb[0].mxu0
      %v1234 = vadd.f32 0.0, %v1233
      %v1235 = vpop.f32.mrb[0].mxu0
      %1236 = vmatprep.mubr.bf16.mxu0 0
      %1237 = vmatmul.mubr.bf16.gmra.mrb[0].mxu0 %v1168
      %v1238 = vpop.f32.mrb[0].mxu0
      %v1239 = vadd.f32 0.0, %v1238
      %v1240 = vpop.f32.mrb[0].mxu0
      %v1241 = vpop.f32.mrb[0].mxu0
      %v1242 = vadd.f32 0.0, %v1241
      %v1243 = vpop.f32.mrb[0].mxu0
      %1244 = vmatprep.mubr.bf16.mxu0 0
      %1245 = vmatmul.mubr.bf16.gmra.mrb[0].mxu0 %v1171
      %v1246 = vpop.f32.mrb[0].mxu0
      %v1247 = vadd.f32 0.0, %v1246
      %v1248 = vpop.f32.mrb[0].mxu0
      %v1249 = vpop.f32.mrb[0].mxu0
      %v1250 = vadd.f32 0.0, %v1249
      %v1251 = vpop.f32.mrb[0].mxu0
      %1252 = vmatprep.mubr.bf16.mxu0 0
      %1253 = vmatmul.mubr.bf16.gmra.mrb[0].mxu0 %v1174
      %v1254 = vpop.f32.mrb[0].mxu0
      %v1255 = vadd.f32 0.0, %v1254
      %v1256 = vpop.f32.mrb[0].mxu0
      %v1257 = vpop.f32.mrb[0].mxu0
      %v1258 = vadd.f32 0.0, %v1257
      %v1259 = vpop.f32.mrb[0].mxu0
      %1260 = vmatprep.mubr.bf16.mxu0 0
      %1261 = vmatmul.mubr.bf16.gmra.mrb[0].mxu0 %v1177
      %v1262 = vpop.f32.mrb[0].mxu0
      %v1263 = vadd.f32 0.0, %v1262
      %v1264 = vpop.f32.mrb[0].mxu0
      %v1265 = vpop.f32.mrb[0].mxu0
      %v1266 = vadd.f32 0.0, %v1265
      %v1267 = vpop.f32.mrb[0].mxu0
      %1268 = vmatprep.mubr.bf16.mxu0 0
      %1269 = vmatmul.mubr.bf16.gmra.mrb[0].mxu0 %v1180
      %v1270 = vpop.f32.mrb[0].mxu0
      %v1271 = vadd.f32 0.0, %v1270
      %v1272 = vpop.f32.mrb[0].mxu0
      %v1273 = vpop.f32.mrb[0].mxu0
      %v1274 = vadd.f32 0.0, %v1273
      %v1275 = vpop.f32.mrb[0].mxu0
      %1276 = vmatprep.mubr.bf16.mxu0 0
      %1277 = vmatmul.mubr.bf16.gmra.mrb[0].mxu0 %v1183
      %v1278 = vpop.f32.mrb[0].mxu0
      %v1279 = vadd.f32 0.0, %v1278
      %v1280 = vpop.f32.mrb[0].mxu0
      %v1281 = vpop.f32.mrb[0].mxu0
      %v1282 = vadd.f32 0.0, %v1281
      %v1283 = vpop.f32.mrb[0].mxu0
      %1284 = vdwg.mxu0
      %v1285 = vadd.f32 %v1055, %v1223
      %v1286 = vadd.f32 %v1056, %v1226
      %v1287 = vadd.f32 %v1057, %v1231
      %v1288 = vadd.f32 %v1058, %v1234
      %v1289 = vadd.f32 %v1059, %v1239
      %v1290 = vadd.f32 %v1060, %v1242
      %v1291 = vadd.f32 %v1061, %v1247
      %v1292 = vadd.f32 %v1062, %v1250
      %v1293 = vadd.f32 %v1063, %v1255
      %v1294 = vadd.f32 %v1064, %v1258
      %v1295 = vadd.f32 %v1065, %v1263
      %v1296 = vadd.f32 %v1066, %v1266
      %v1297 = vadd.f32 %v1067, %v1271
      %v1298 = vadd.f32 %v1068, %v1274
      %v1299 = vadd.f32 %v1069, %v1279
      %v1300 = vadd.f32 %v1070, %v1282
      %v1301 = vrot.slane %v865, 6
      %v1302 = vrot.slane %v1301, 4
      %v1303 = vrot.slane %v866, 6
      %v1304 = vsel %vm638, %v1302, %v1303
      %v1305 = vrot.slane %v1303, 4
      %v1306 = vrot.slane %v867, 6
      %v1307 = vsel %vm638, %v1305, %v1306
      %v1308 = vrot.slane %v868, 6
      %v1309 = vrot.slane %v1308, 4
      %v1310 = vrot.slane %v869, 6
      %v1311 = vsel %vm638, %v1309, %v1310
      %v1312 = vrot.slane %v1310, 4
      %v1313 = vrot.slane %v870, 6
      %v1314 = vsel %vm638, %v1312, %v1313
      %v1315 = vrot.slane %v871, 6
      %v1316 = vrot.slane %v1315, 4
      %v1317 = vrot.slane %v872, 6
      %v1318 = vsel %vm638, %v1316, %v1317
      %v1319 = vrot.slane %v1317, 4
      %v1320 = vrot.slane %v873, 6
      %v1321 = vsel %vm638, %v1319, %v1320
      %v1322 = vrot.slane %v874, 6
      %v1323 = vrot.slane %v1322, 4
      %v1324 = vrot.slane %v875, 6
      %v1325 = vsel %vm638, %v1323, %v1324
      %v1326 = vrot.slane %v1324, 4
      %v1327 = vrot.slane %v876, 6
      %v1328 = vsel %vm638, %v1326, %v1327
      %v1329 = vrot.slane %v877, 6
      %v1330 = vrot.slane %v1329, 4
      %v1331 = vrot.slane %v878, 6
      %v1332 = vsel %vm638, %v1330, %v1331
      %v1333 = vrot.slane %v1331, 4
      %v1334 = vrot.slane %v879, 6
      %v1335 = vsel %vm638, %v1333, %v1334
      %v1336 = vrot.slane %v880, 6
      %v1337 = vrot.slane %v1336, 4
      %v1338 = vrot.slane %v881, 6
      %v1339 = vsel %vm638, %v1337, %v1338
      %v1340 = vrot.slane %v1338, 4
      %v1341 = vrot.slane %v882, 6
      %v1342 = vsel %vm638, %v1340, %v1341
      %v1343 = vrot.slane %v883, 6
      %v1344 = vrot.slane %v1343, 4
      %v1345 = vrot.slane %v884, 6
      %v1346 = vsel %vm638, %v1344, %v1345
      %v1347 = vrot.slane %v1345, 4
      %v1348 = vrot.slane %v885, 6
      %v1349 = vsel %vm638, %v1347, %v1348
      %v1350 = vrot.slane %v886, 6
      %v1351 = vrot.slane %v1350, 4
      %v1352 = vrot.slane %v887, 6
      %v1353 = vsel %vm638, %v1351, %v1352
      %v1354 = vrot.slane %v1352, 4
      %v1355 = vrot.slane %v888, 6
      %v1356 = vsel %vm638, %v1354, %v1355
      %s1357 = scalar_lea.vmem %s1, 10
      %v1358 = vld [vmem:[%s1357] sm:$0x3]
      %v1359 = vunpack.c.l.b16 %v1304
      %v1360 = vunpack.c.l.b16 %v1307
      %v1361 = vunpack.c.l.b16 %v1311
      %v1362 = vunpack.c.l.b16 %v1314
      %v1363 = vunpack.c.l.b16 %v1318
      %v1364 = vunpack.c.l.b16 %v1321
      %v1365 = vunpack.c.l.b16 %v1325
      %v1366 = vunpack.c.l.b16 %v1328
      %v1367 = vunpack.c.l.b16 %v1332
      %v1368 = vunpack.c.l.b16 %v1335
      %v1369 = vunpack.c.l.b16 %v1339
      %v1370 = vunpack.c.l.b16 %v1342
      %v1371 = vunpack.c.l.b16 %v1346
      %v1372 = vunpack.c.l.b16 %v1349
      %v1373 = vunpack.c.l.b16 %v1353
      %v1374 = vunpack.c.l.b16 %v1356
      %v1375 = vpack.c.b16 %v1360, %v1359
      %v1376 = vpack.c.b16 %v1362, %v1361
      %v1377 = vpack.c.b16 %v1364, %v1363
      %v1378 = vpack.c.b16 %v1366, %v1365
      %v1379 = vpack.c.b16 %v1368, %v1367
      %v1380 = vpack.c.b16 %v1370, %v1369
      %v1381 = vpack.c.b16 %v1372, %v1371
      %v1382 = vpack.c.b16 %v1374, %v1373
      %v1384 = vsel %vm362, %v1375, 0
      %v1387 = vsel %vm362, %v1376, 0
      %v1390 = vsel %vm362, %v1377, 0
      %v1393 = vsel %vm362, %v1378, 0
      %v1396 = vsel %vm362, %v1379, 0
      %v1399 = vsel %vm362, %v1380, 0
      %v1402 = vsel %vm362, %v1381, 0
      %v1405 = vsel %vm362, %v1382, 0
      %v1408 = vsel %vm387, %v1358, 0
      %1410 = vmatprep.subr.bf16.mxu0 0
      %1411 = vmatpush1.bf16.msra.mxu0 %v1408
      %1412 = vmatprep.subr.bf16.mxu0 0
      %1413 = vmatpush1.bf16.msra.mxu0 0
      %1414 = vmatprep.subr.bf16.mxu0 0
      %1415 = vmatpush1.bf16.msra.mxu0 0
      %1416 = vmatprep.subr.bf16.mxu0 0
      %1417 = vmatpush1.bf16.msra.mxu0 0
      %1418 = vmatprep.subr.bf16.mxu0 0
      %1419 = vmatpush1.bf16.msra.mxu0 0
      %1420 = vmatprep.subr.bf16.mxu0 0
      %1421 = vmatpush1.bf16.msra.mxu0 0
      %1422 = vmatprep.subr.bf16.mxu0 0
      %1423 = vmatpush1.bf16.msra.mxu0 0
      %1424 = vmatprep.subr.bf16.mxu0 0
      %1425 = vmatpush1.bf16.msra.mxu0 0
      %1426 = vmatprep.subr.bf16.mxu0 0
      %1427 = vmatpush1.bf16.msra.mxu0 0
      %1428 = vmatprep.subr.bf16.mxu0 0
      %1429 = vmatpush1.bf16.msra.mxu0 0
      %1430 = vmatprep.subr.bf16.mxu0 0
      %1431 = vmatpush1.bf16.msra.mxu0 0
      %1432 = vmatprep.subr.bf16.mxu0 0
      %1433 = vmatpush1.bf16.msra.mxu0 0
      %1434 = vmatprep.subr.bf16.mxu0 0
      %1435 = vmatpush1.bf16.msra.mxu0 0
      %1436 = vmatprep.subr.bf16.mxu0 0
      %1437 = vmatpush1.bf16.msra.mxu0 0
      %1438 = vmatprep.subr.bf16.mxu0 0
      %1439 = vmatpush1.bf16.msra.mxu0 0
      %1440 = vmatprep.subr.bf16.mxu0 0
      %1441 = vmatpush1.bf16.msra.mxu0 0
      %1442 = vmatprep.mubr.bf16.mxu0 0
      %1443 = vmatmul.mubr.bf16.gmra.mrb[0].mxu0 %v1384
      %v1444 = vpop.f32.mrb[0].mxu0
      %v1445 = vadd.f32 0.0, %v1444
      %v1446 = vpop.f32.mrb[0].mxu0
      %v1447 = vpop.f32.mrb[0].mxu0
      %v1448 = vadd.f32 0.0, %v1447
      %v1449 = vpop.f32.mrb[0].mxu0
      %1450 = vmatprep.mubr.bf16.mxu0 0
      %1451 = vmatmul.mubr.bf16.gmra.mrb[0].mxu0 %v1387
      %v1452 = vpop.f32.mrb[0].mxu0
      %v1453 = vadd.f32 0.0, %v1452
      %v1454 = vpop.f32.mrb[0].mxu0
      %v1455 = vpop.f32.mrb[0].mxu0
      %v1456 = vadd.f32 0.0, %v1455
      %v1457 = vpop.f32.mrb[0].mxu0
      %1458 = vmatprep.mubr.bf16.mxu0 0
      %1459 = vmatmul.mubr.bf16.gmra.mrb[0].mxu0 %v1390
      %v1460 = vpop.f32.mrb[0].mxu0
      %v1461 = vadd.f32 0.0, %v1460
      %v1462 = vpop.f32.mrb[0].mxu0
      %v1463 = vpop.f32.mrb[0].mxu0
      %v1464 = vadd.f32 0.0, %v1463
      %v1465 = vpop.f32.mrb[0].mxu0
      %1466 = vmatprep.mubr.bf16.mxu0 0
      %1467 = vmatmul.mubr.bf16.gmra.mrb[0].mxu0 %v1393
      %v1468 = vpop.f32.mrb[0].mxu0
      %v1469 = vadd.f32 0.0, %v1468
      %v1470 = vpop.f32.mrb[0].mxu0
      %v1471 = vpop.f32.mrb[0].mxu0
      %v1472 = vadd.f32 0.0, %v1471
      %v1473 = vpop.f32.mrb[0].mxu0
      %1474 = vmatprep.mubr.bf16.mxu0 0
      %1475 = vmatmul.mubr.bf16.gmra.mrb[0].mxu0 %v1396
      %v1476 = vpop.f32.mrb[0].mxu0
      %v1477 = vadd.f32 0.0, %v1476
      %v1478 = vpop.f32.mrb[0].mxu0
      %v1479 = vpop.f32.mrb[0].mxu0
      %v1480 = vadd.f32 0.0, %v1479
      %v1481 = vpop.f32.mrb[0].mxu0
      %1482 = vmatprep.mubr.bf16.mxu0 0
      %1483 = vmatmul.mubr.bf16.gmra.mrb[0].mxu0 %v1399
      %v1484 = vpop.f32.mrb[0].mxu0
      %v1485 = vadd.f32 0.0, %v1484
      %v1486 = vpop.f32.mrb[0].mxu0
      %v1487 = vpop.f32.mrb[0].mxu0
      %v1488 = vadd.f32 0.0, %v1487
      %v1489 = vpop.f32.mrb[0].mxu0
      %1490 = vmatprep.mubr.bf16.mxu0 0
      %1491 = vmatmul.mubr.bf16.gmra.mrb[0].mxu0 %v1402
      %v1492 = vpop.f32.mrb[0].mxu0
      %v1493 = vadd.f32 0.0, %v1492
      %v1494 = vpop.f32.mrb[0].mxu0
      %v1495 = vpop.f32.mrb[0].mxu0
      %v1496 = vadd.f32 0.0, %v1495
      %v1497 = vpop.f32.mrb[0].mxu0
      %1498 = vmatprep.mubr.bf16.mxu0 0
      %1499 = vmatmul.mubr.bf16.gmra.mrb[0].mxu0 %v1405
      %v1500 = vpop.f32.mrb[0].mxu0
      %v1501 = vadd.f32 0.0, %v1500
      %v1502 = vpop.f32.mrb[0].mxu0
      %v1503 = vpop.f32.mrb[0].mxu0
      %v1504 = vadd.f32 0.0, %v1503
      %v1505 = vpop.f32.mrb[0].mxu0
      %1506 = vdwg.mxu0
      %v1507 = vadd.f32 %v1285, %v1445
      %v1508 = vadd.f32 %v1286, %v1448
      %v1509 = vadd.f32 %v1287, %v1453
      %v1510 = vadd.f32 %v1288, %v1456
      %v1511 = vadd.f32 %v1289, %v1461
      %v1512 = vadd.f32 %v1290, %v1464
      %v1513 = vadd.f32 %v1291, %v1469
      %v1514 = vadd.f32 %v1292, %v1472
      %v1515 = vadd.f32 %v1293, %v1477
      %v1516 = vadd.f32 %v1294, %v1480
      %v1517 = vadd.f32 %v1295, %v1485
      %v1518 = vadd.f32 %v1296, %v1488
      %v1519 = vadd.f32 %v1297, %v1493
      %v1520 = vadd.f32 %v1298, %v1496
      %v1521 = vadd.f32 %v1299, %v1501
      %v1522 = vadd.f32 %v1300, %v1504
      %s1523 = sadd.s32 %s224, 4
      %s1524 = smul.u32 %s1523, 3
      %s1525 = smul.addr %s1524, 4
      %s1526 = scalar_lea.vmem %s211, %s1525
      %v1527 = vld [vmem:[%s1526] sm:$0xf]
      %v1528 = vld [vmem:[%s1526 + $0x4] sm:$0xf]
      %v1529 = vld [vmem:[%s1526 + $0x8] sm:$0x3]
      %v1530 = vld [vmem:[%s1526 + $0xc] sm:$0xf]
      %v1531 = vld [vmem:[%s1526 + $0x10] sm:$0xf]
      %v1532 = vld [vmem:[%s1526 + $0x14] sm:$0x3]
      %v1533 = vld [vmem:[%s1526 + $0x18] sm:$0xf]
      %v1534 = vld [vmem:[%s1526 + $0x1c] sm:$0xf]
      %v1535 = vld [vmem:[%s1526 + $0x20] sm:$0x3]
      %v1536 = vld [vmem:[%s1526 + $0x24] sm:$0xf]
      %v1537 = vld [vmem:[%s1526 + $0x28] sm:$0xf]
      %v1538 = vld [vmem:[%s1526 + $0x2c] sm:$0x3]
      %v1539 = vld [vmem:[%s1526 + $0x30] sm:$0xf]
      %v1540 = vld [vmem:[%s1526 + $0x34] sm:$0xf]
      %v1541 = vld [vmem:[%s1526 + $0x38] sm:$0x3]
      %v1542 = vld [vmem:[%s1526 + $0x3c] sm:$0xf]
      %v1543 = vld [vmem:[%s1526 + $0x40] sm:$0xf]
      %v1544 = vld [vmem:[%s1526 + $0x44] sm:$0x3]
      %v1545 = vld [vmem:[%s1526 + $0x48] sm:$0xf]
      %v1546 = vld [vmem:[%s1526 + $0x4c] sm:$0xf]
      %v1547 = vld [vmem:[%s1526 + $0x50] sm:$0x3]
      %v1548 = vld [vmem:[%s1526 + $0x54] sm:$0xf]
      %v1549 = vld [vmem:[%s1526 + $0x58] sm:$0xf]
      %v1550 = vld [vmem:[%s1526 + $0x5c] sm:$0x3]
      %s1551 = scalar_lea.vmem %s1, 12
      %v1552 = vld [vmem:[%s1551] sm:$0x3]
      %v1569 = vunpack.c.l.b16 %v1527
      %v1570 = vunpack.c.l.b16 %v1528
      %v1571 = vunpack.c.l.b16 %v1530
      %v1572 = vunpack.c.l.b16 %v1531
      %v1573 = vunpack.c.l.b16 %v1533
      %v1574 = vunpack.c.l.b16 %v1534
      %v1575 = vunpack.c.l.b16 %v1536
      %v1576 = vunpack.c.l.b16 %v1537
      %v1577 = vunpack.c.l.b16 %v1539
      %v1578 = vunpack.c.l.b16 %v1540
      %v1579 = vunpack.c.l.b16 %v1542
      %v1580 = vunpack.c.l.b16 %v1543
      %v1581 = vunpack.c.l.b16 %v1545
      %v1582 = vunpack.c.l.b16 %v1546
      %v1583 = vunpack.c.l.b16 %v1548
      %v1584 = vunpack.c.l.b16 %v1549
      %v1585 = vpack.c.b16 %v1570, %v1569
      %v1586 = vpack.c.b16 %v1572, %v1571
      %v1587 = vpack.c.b16 %v1574, %v1573
      %v1588 = vpack.c.b16 %v1576, %v1575
      %v1589 = vpack.c.b16 %v1578, %v1577
      %v1590 = vpack.c.b16 %v1580, %v1579
      %v1591 = vpack.c.b16 %v1582, %v1581
      %v1592 = vpack.c.b16 %v1584, %v1583
      %v1594 = vsel %vm362, %v1585, 0
      %v1597 = vsel %vm362, %v1586, 0
      %v1600 = vsel %vm362, %v1587, 0
      %v1603 = vsel %vm362, %v1588, 0
      %v1606 = vsel %vm362, %v1589, 0
      %v1609 = vsel %vm362, %v1590, 0
      %v1612 = vsel %vm362, %v1591, 0
      %v1615 = vsel %vm362, %v1592, 0
      %v1618 = vsel %vm387, %v1552, 0
      %1620 = vmatprep.subr.bf16.mxu0 0
      %1621 = vmatpush1.bf16.msra.mxu0 %v1618
      %1622 = vmatprep.subr.bf16.mxu0 0
      %1623 = vmatpush1.bf16.msra.mxu0 0
      %1624 = vmatprep.subr.bf16.mxu0 0
      %1625 = vmatpush1.bf16.msra.mxu0 0
      %1626 = vmatprep.subr.bf16.mxu0 0
      %1627 = vmatpush1.bf16.msra.mxu0 0
      %1628 = vmatprep.subr.bf16.mxu0 0
      %1629 = vmatpush1.bf16.msra.mxu0 0
      %1630 = vmatprep.subr.bf16.mxu0 0
      %1631 = vmatpush1.bf16.msra.mxu0 0
      %1632 = vmatprep.subr.bf16.mxu0 0
      %1633 = vmatpush1.bf16.msra.mxu0 0
      %1634 = vmatprep.subr.bf16.mxu0 0
      %1635 = vmatpush1.bf16.msra.mxu0 0
      %1636 = vmatprep.subr.bf16.mxu0 0
      %1637 = vmatpush1.bf16.msra.mxu0 0
      %1638 = vmatprep.subr.bf16.mxu0 0
      %1639 = vmatpush1.bf16.msra.mxu0 0
      %1640 = vmatprep.subr.bf16.mxu0 0
      %1641 = vmatpush1.bf16.msra.mxu0 0
      %1642 = vmatprep.subr.bf16.mxu0 0
      %1643 = vmatpush1.bf16.msra.mxu0 0
      %1644 = vmatprep.subr.bf16.mxu0 0
      %1645 = vmatpush1.bf16.msra.mxu0 0
      %1646 = vmatprep.subr.bf16.mxu0 0
      %1647 = vmatpush1.bf16.msra.mxu0 0
      %1648 = vmatprep.subr.bf16.mxu0 0
      %1649 = vmatpush1.bf16.msra.mxu0 0
      %1650 = vmatprep.subr.bf16.mxu0 0
      %1651 = vmatpush1.bf16.msra.mxu0 0
      %1652 = vmatprep.mubr.bf16.mxu0 0
      %1653 = vmatmul.mubr.bf16.gmra.mrb[0].mxu0 %v1594
      %v1654 = vpop.f32.mrb[0].mxu0
      %v1655 = vadd.f32 0.0, %v1654
      %v1656 = vpop.f32.mrb[0].mxu0
      %v1657 = vpop.f32.mrb[0].mxu0
      %v1658 = vadd.f32 0.0, %v1657
      %v1659 = vpop.f32.mrb[0].mxu0
      %1660 = vmatprep.mubr.bf16.mxu0 0
      %1661 = vmatmul.mubr.bf16.gmra.mrb[0].mxu0 %v1597
      %v1662 = vpop.f32.mrb[0].mxu0
      %v1663 = vadd.f32 0.0, %v1662
      %v1664 = vpop.f32.mrb[0].mxu0
      %v1665 = vpop.f32.mrb[0].mxu0
      %v1666 = vadd.f32 0.0, %v1665
      %v1667 = vpop.f32.mrb[0].mxu0
      %1668 = vmatprep.mubr.bf16.mxu0 0
      %1669 = vmatmul.mubr.bf16.gmra.mrb[0].mxu0 %v1600
      %v1670 = vpop.f32.mrb[0].mxu0
      %v1671 = vadd.f32 0.0, %v1670
      %v1672 = vpop.f32.mrb[0].mxu0
      %v1673 = vpop.f32.mrb[0].mxu0
      %v1674 = vadd.f32 0.0, %v1673
      %v1675 = vpop.f32.mrb[0].mxu0
      %1676 = vmatprep.mubr.bf16.mxu0 0
      %1677 = vmatmul.mubr.bf16.gmra.mrb[0].mxu0 %v1603
      %v1678 = vpop.f32.mrb[0].mxu0
      %v1679 = vadd.f32 0.0, %v1678
      %v1680 = vpop.f32.mrb[0].mxu0
      %v1681 = vpop.f32.mrb[0].mxu0
      %v1682 = vadd.f32 0.0, %v1681
      %v1683 = vpop.f32.mrb[0].mxu0
      %1684 = vmatprep.mubr.bf16.mxu0 0
      %1685 = vmatmul.mubr.bf16.gmra.mrb[0].mxu0 %v1606
      %v1686 = vpop.f32.mrb[0].mxu0
      %v1687 = vadd.f32 0.0, %v1686
      %v1688 = vpop.f32.mrb[0].mxu0
      %v1689 = vpop.f32.mrb[0].mxu0
      %v1690 = vadd.f32 0.0, %v1689
      %v1691 = vpop.f32.mrb[0].mxu0
      %1692 = vmatprep.mubr.bf16.mxu0 0
      %1693 = vmatmul.mubr.bf16.gmra.mrb[0].mxu0 %v1609
      %v1694 = vpop.f32.mrb[0].mxu0
      %v1695 = vadd.f32 0.0, %v1694
      %v1696 = vpop.f32.mrb[0].mxu0
      %v1697 = vpop.f32.mrb[0].mxu0
      %v1698 = vadd.f32 0.0, %v1697
      %v1699 = vpop.f32.mrb[0].mxu0
      %1700 = vmatprep.mubr.bf16.mxu0 0
      %1701 = vmatmul.mubr.bf16.gmra.mrb[0].mxu0 %v1612
      %v1702 = vpop.f32.mrb[0].mxu0
      %v1703 = vadd.f32 0.0, %v1702
      %v1704 = vpop.f32.mrb[0].mxu0
      %v1705 = vpop.f32.mrb[0].mxu0
      %v1706 = vadd.f32 0.0, %v1705
      %v1707 = vpop.f32.mrb[0].mxu0
      %1708 = vmatprep.mubr.bf16.mxu0 0
      %1709 = vmatmul.mubr.bf16.gmra.mrb[0].mxu0 %v1615
      %v1710 = vpop.f32.mrb[0].mxu0
      %v1711 = vadd.f32 0.0, %v1710
      %v1712 = vpop.f32.mrb[0].mxu0
      %v1713 = vpop.f32.mrb[0].mxu0
      %v1714 = vadd.f32 0.0, %v1713
      %v1715 = vpop.f32.mrb[0].mxu0
      %1716 = vdwg.mxu0
      %v1717 = vadd.f32 %v1507, %v1655
      %v1718 = vadd.f32 %v1508, %v1658
      %v1719 = vadd.f32 %v1509, %v1663
      %v1720 = vadd.f32 %v1510, %v1666
      %v1721 = vadd.f32 %v1511, %v1671
      %v1722 = vadd.f32 %v1512, %v1674
      %v1723 = vadd.f32 %v1513, %v1679
      %v1724 = vadd.f32 %v1514, %v1682
      %v1725 = vadd.f32 %v1515, %v1687
      %v1726 = vadd.f32 %v1516, %v1690
      %v1727 = vadd.f32 %v1517, %v1695
      %v1728 = vadd.f32 %v1518, %v1698
      %v1729 = vadd.f32 %v1519, %v1703
      %v1730 = vadd.f32 %v1520, %v1706
      %v1731 = vadd.f32 %v1521, %v1711
      %v1732 = vadd.f32 %v1522, %v1714
      %v1741 = vrot.slane %v1527, 5
      %v1742 = vrot.slane %v1741, 4
      %v1743 = vrot.slane %v1528, 5
      %v1744 = vsel %vm279, %v1742, %v1743
      %v1745 = vrot.slane %v1743, 4
      %v1746 = vrot.slane %v1529, 5
      %v1747 = vsel %vm279, %v1745, %v1746
      %v1748 = vrot.slane %v1530, 5
      %v1749 = vrot.slane %v1748, 4
      %v1750 = vrot.slane %v1531, 5
      %v1751 = vsel %vm279, %v1749, %v1750
      %v1752 = vrot.slane %v1750, 4
      %v1753 = vrot.slane %v1532, 5
      %v1754 = vsel %vm279, %v1752, %v1753
      %v1755 = vrot.slane %v1533, 5
      %v1756 = vrot.slane %v1755, 4
      %v1757 = vrot.slane %v1534, 5
      %v1758 = vsel %vm279, %v1756, %v1757
      %v1759 = vrot.slane %v1757, 4
      %v1760 = vrot.slane %v1535, 5
      %v1761 = vsel %vm279, %v1759, %v1760
      %v1762 = vrot.slane %v1536, 5
      %v1763 = vrot.slane %v1762, 4
      %v1764 = vrot.slane %v1537, 5
      %v1765 = vsel %vm279, %v1763, %v1764
      %v1766 = vrot.slane %v1764, 4
      %v1767 = vrot.slane %v1538, 5
      %v1768 = vsel %vm279, %v1766, %v1767
      %v1769 = vrot.slane %v1539, 5
      %v1770 = vrot.slane %v1769, 4
      %v1771 = vrot.slane %v1540, 5
      %v1772 = vsel %vm279, %v1770, %v1771
      %v1773 = vrot.slane %v1771, 4
      %v1774 = vrot.slane %v1541, 5
      %v1775 = vsel %vm279, %v1773, %v1774
      %v1776 = vrot.slane %v1542, 5
      %v1777 = vrot.slane %v1776, 4
      %v1778 = vrot.slane %v1543, 5
      %v1779 = vsel %vm279, %v1777, %v1778
      %v1780 = vrot.slane %v1778, 4
      %v1781 = vrot.slane %v1544, 5
      %v1782 = vsel %vm279, %v1780, %v1781
      %v1783 = vrot.slane %v1545, 5
      %v1784 = vrot.slane %v1783, 4
      %v1785 = vrot.slane %v1546, 5
      %v1786 = vsel %vm279, %v1784, %v1785
      %v1787 = vrot.slane %v1785, 4
      %v1788 = vrot.slane %v1547, 5
      %v1789 = vsel %vm279, %v1787, %v1788
      %v1790 = vrot.slane %v1548, 5
      %v1791 = vrot.slane %v1790, 4
      %v1792 = vrot.slane %v1549, 5
      %v1793 = vsel %vm279, %v1791, %v1792
      %v1794 = vrot.slane %v1792, 4
      %v1795 = vrot.slane %v1550, 5
      %v1796 = vsel %vm279, %v1794, %v1795
      %s1797 = scalar_lea.vmem %s1, 14
      %v1798 = vld [vmem:[%s1797] sm:$0x3]
      %v1799 = vunpack.c.l.b16 %v1744
      %v1800 = vunpack.c.l.b16 %v1747
      %v1801 = vunpack.c.l.b16 %v1751
      %v1802 = vunpack.c.l.b16 %v1754
      %v1803 = vunpack.c.l.b16 %v1758
      %v1804 = vunpack.c.l.b16 %v1761
      %v1805 = vunpack.c.l.b16 %v1765
      %v1806 = vunpack.c.l.b16 %v1768
      %v1807 = vunpack.c.l.b16 %v1772
      %v1808 = vunpack.c.l.b16 %v1775
      %v1809 = vunpack.c.l.b16 %v1779
      %v1810 = vunpack.c.l.b16 %v1782
      %v1811 = vunpack.c.l.b16 %v1786
      %v1812 = vunpack.c.l.b16 %v1789
      %v1813 = vunpack.c.l.b16 %v1793
      %v1814 = vunpack.c.l.b16 %v1796
      %v1815 = vpack.c.b16 %v1800, %v1799
      %v1816 = vpack.c.b16 %v1802, %v1801
      %v1817 = vpack.c.b16 %v1804, %v1803
      %v1818 = vpack.c.b16 %v1806, %v1805
      %v1819 = vpack.c.b16 %v1808, %v1807
      %v1820 = vpack.c.b16 %v1810, %v1809
      %v1821 = vpack.c.b16 %v1812, %v1811
      %v1822 = vpack.c.b16 %v1814, %v1813
      %v1824 = vsel %vm362, %v1815, 0
      %v1827 = vsel %vm362, %v1816, 0
      %v1830 = vsel %vm362, %v1817, 0
      %v1833 = vsel %vm362, %v1818, 0
      %v1836 = vsel %vm362, %v1819, 0
      %v1839 = vsel %vm362, %v1820, 0
      %v1842 = vsel %vm362, %v1821, 0
      %v1845 = vsel %vm362, %v1822, 0
      %v1848 = vsel %vm387, %v1798, 0
      %1850 = vmatprep.subr.bf16.mxu0 0
      %1851 = vmatpush1.bf16.msra.mxu0 %v1848
      %1852 = vmatprep.subr.bf16.mxu0 0
      %1853 = vmatpush1.bf16.msra.mxu0 0
      %1854 = vmatprep.subr.bf16.mxu0 0
      %1855 = vmatpush1.bf16.msra.mxu0 0
      %1856 = vmatprep.subr.bf16.mxu0 0
      %1857 = vmatpush1.bf16.msra.mxu0 0
      %1858 = vmatprep.subr.bf16.mxu0 0
      %1859 = vmatpush1.bf16.msra.mxu0 0
      %1860 = vmatprep.subr.bf16.mxu0 0
      %1861 = vmatpush1.bf16.msra.mxu0 0
      %1862 = vmatprep.subr.bf16.mxu0 0
      %1863 = vmatpush1.bf16.msra.mxu0 0
      %1864 = vmatprep.subr.bf16.mxu0 0
      %1865 = vmatpush1.bf16.msra.mxu0 0
      %1866 = vmatprep.subr.bf16.mxu0 0
      %1867 = vmatpush1.bf16.msra.mxu0 0
      %1868 = vmatprep.subr.bf16.mxu0 0
      %1869 = vmatpush1.bf16.msra.mxu0 0
      %1870 = vmatprep.subr.bf16.mxu0 0
      %1871 = vmatpush1.bf16.msra.mxu0 0
      %1872 = vmatprep.subr.bf16.mxu0 0
      %1873 = vmatpush1.bf16.msra.mxu0 0
      %1874 = vmatprep.subr.bf16.mxu0 0
      %1875 = vmatpush1.bf16.msra.mxu0 0
      %1876 = vmatprep.subr.bf16.mxu0 0
      %1877 = vmatpush1.bf16.msra.mxu0 0
      %1878 = vmatprep.subr.bf16.mxu0 0
      %1879 = vmatpush1.bf16.msra.mxu0 0
      %1880 = vmatprep.subr.bf16.mxu0 0
      %1881 = vmatpush1.bf16.msra.mxu0 0
      %1882 = vmatprep.mubr.bf16.mxu0 0
      %1883 = vmatmul.mubr.bf16.gmra.mrb[0].mxu0 %v1824
      %v1884 = vpop.f32.mrb[0].mxu0
      %v1885 = vadd.f32 0.0, %v1884
      %v1886 = vpop.f32.mrb[0].mxu0
      %v1887 = vpop.f32.mrb[0].mxu0
      %v1888 = vadd.f32 0.0, %v1887
      %v1889 = vpop.f32.mrb[0].mxu0
      %1890 = vmatprep.mubr.bf16.mxu0 0
      %1891 = vmatmul.mubr.bf16.gmra.mrb[0].mxu0 %v1827
      %v1892 = vpop.f32.mrb[0].mxu0
      %v1893 = vadd.f32 0.0, %v1892
      %v1894 = vpop.f32.mrb[0].mxu0
      %v1895 = vpop.f32.mrb[0].mxu0
      %v1896 = vadd.f32 0.0, %v1895
      %v1897 = vpop.f32.mrb[0].mxu0
      %1898 = vmatprep.mubr.bf16.mxu0 0
      %1899 = vmatmul.mubr.bf16.gmra.mrb[0].mxu0 %v1830
      %v1900 = vpop.f32.mrb[0].mxu0
      %v1901 = vadd.f32 0.0, %v1900
      %v1902 = vpop.f32.mrb[0].mxu0
      %v1903 = vpop.f32.mrb[0].mxu0
      %v1904 = vadd.f32 0.0, %v1903
      %v1905 = vpop.f32.mrb[0].mxu0
      %1906 = vmatprep.mubr.bf16.mxu0 0
      %1907 = vmatmul.mubr.bf16.gmra.mrb[0].mxu0 %v1833
      %v1908 = vpop.f32.mrb[0].mxu0
      %v1909 = vadd.f32 0.0, %v1908
      %v1910 = vpop.f32.mrb[0].mxu0
      %v1911 = vpop.f32.mrb[0].mxu0
      %v1912 = vadd.f32 0.0, %v1911
      %v1913 = vpop.f32.mrb[0].mxu0
      %1914 = vmatprep.mubr.bf16.mxu0 0
      %1915 = vmatmul.mubr.bf16.gmra.mrb[0].mxu0 %v1836
      %v1916 = vpop.f32.mrb[0].mxu0
      %v1917 = vadd.f32 0.0, %v1916
      %v1918 = vpop.f32.mrb[0].mxu0
      %v1919 = vpop.f32.mrb[0].mxu0
      %v1920 = vadd.f32 0.0, %v1919
      %v1921 = vpop.f32.mrb[0].mxu0
      %1922 = vmatprep.mubr.bf16.mxu0 0
      %1923 = vmatmul.mubr.bf16.gmra.mrb[0].mxu0 %v1839
      %v1924 = vpop.f32.mrb[0].mxu0
      %v1925 = vadd.f32 0.0, %v1924
      %v1926 = vpop.f32.mrb[0].mxu0
      %v1927 = vpop.f32.mrb[0].mxu0
      %v1928 = vadd.f32 0.0, %v1927
      %v1929 = vpop.f32.mrb[0].mxu0
      %1930 = vmatprep.mubr.bf16.mxu0 0
      %1931 = vmatmul.mubr.bf16.gmra.mrb[0].mxu0 %v1842
      %v1932 = vpop.f32.mrb[0].mxu0
      %v1933 = vadd.f32 0.0, %v1932
      %v1934 = vpop.f32.mrb[0].mxu0
      %v1935 = vpop.f32.mrb[0].mxu0
      %v1936 = vadd.f32 0.0, %v1935
      %v1937 = vpop.f32.mrb[0].mxu0
      %1938 = vmatprep.mubr.bf16.mxu0 0
      %1939 = vmatmul.mubr.bf16.gmra.mrb[0].mxu0 %v1845
      %v1940 = vpop.f32.mrb[0].mxu0
      %v1941 = vadd.f32 0.0, %v1940
      %v1942 = vpop.f32.mrb[0].mxu0
      %v1943 = vpop.f32.mrb[0].mxu0
      %v1944 = vadd.f32 0.0, %v1943
      %v1945 = vpop.f32.mrb[0].mxu0
      %1946 = vdwg.mxu0
      %v1947 = vadd.f32 %v1717, %v1885
      %v1948 = vadd.f32 %v1718, %v1888
      %v1949 = vadd.f32 %v1719, %v1893
      %v1950 = vadd.f32 %v1720, %v1896
      %v1951 = vadd.f32 %v1721, %v1901
      %v1952 = vadd.f32 %v1722, %v1904
      %v1953 = vadd.f32 %v1723, %v1909
      %v1954 = vadd.f32 %v1724, %v1912
      %v1955 = vadd.f32 %v1725, %v1917
      %v1956 = vadd.f32 %v1726, %v1920
      %v1957 = vadd.f32 %v1727, %v1925
      %v1958 = vadd.f32 %v1728, %v1928
      %v1959 = vadd.f32 %v1729, %v1933
      %v1960 = vadd.f32 %v1730, %v1936
      %v1961 = vadd.f32 %v1731, %v1941
      %v1962 = vadd.f32 %v1732, %v1944
      %v1963 = vrot.slane %v1527, 6
      %v1964 = vrot.slane %v1963, 4
      %v1965 = vrot.slane %v1528, 6
      %v1966 = vsel %vm638, %v1964, %v1965
      %v1967 = vrot.slane %v1965, 4
      %v1968 = vrot.slane %v1529, 6
      %v1969 = vsel %vm638, %v1967, %v1968
      %v1970 = vrot.slane %v1530, 6
      %v1971 = vrot.slane %v1970, 4
      %v1972 = vrot.slane %v1531, 6
      %v1973 = vsel %vm638, %v1971, %v1972
      %v1974 = vrot.slane %v1972, 4
      %v1975 = vrot.slane %v1532, 6
      %v1976 = vsel %vm638, %v1974, %v1975
      %v1977 = vrot.slane %v1533, 6
      %v1978 = vrot.slane %v1977, 4
      %v1979 = vrot.slane %v1534, 6
      %v1980 = vsel %vm638, %v1978, %v1979
      %v1981 = vrot.slane %v1979, 4
      %v1982 = vrot.slane %v1535, 6
      %v1983 = vsel %vm638, %v1981, %v1982
      %v1984 = vrot.slane %v1536, 6
      %v1985 = vrot.slane %v1984, 4
      %v1986 = vrot.slane %v1537, 6
      %v1987 = vsel %vm638, %v1985, %v1986
      %v1988 = vrot.slane %v1986, 4
      %v1989 = vrot.slane %v1538, 6
      %v1990 = vsel %vm638, %v1988, %v1989
      %v1991 = vrot.slane %v1539, 6
      %v1992 = vrot.slane %v1991, 4
      %v1993 = vrot.slane %v1540, 6
      %v1994 = vsel %vm638, %v1992, %v1993
      %v1995 = vrot.slane %v1993, 4
      %v1996 = vrot.slane %v1541, 6
      %v1997 = vsel %vm638, %v1995, %v1996
      %v1998 = vrot.slane %v1542, 6
      %v1999 = vrot.slane %v1998, 4
      %v2000 = vrot.slane %v1543, 6
      %v2001 = vsel %vm638, %v1999, %v2000
      %v2002 = vrot.slane %v2000, 4
      %v2003 = vrot.slane %v1544, 6
      %v2004 = vsel %vm638, %v2002, %v2003
      %v2005 = vrot.slane %v1545, 6
      %v2006 = vrot.slane %v2005, 4
      %v2007 = vrot.slane %v1546, 6
      %v2008 = vsel %vm638, %v2006, %v2007
      %v2009 = vrot.slane %v2007, 4
      %v2010 = vrot.slane %v1547, 6
      %v2011 = vsel %vm638, %v2009, %v2010
      %v2012 = vrot.slane %v1548, 6
      %v2013 = vrot.slane %v2012, 4
      %v2014 = vrot.slane %v1549, 6
      %v2015 = vsel %vm638, %v2013, %v2014
      %v2016 = vrot.slane %v2014, 4
      %v2017 = vrot.slane %v1550, 6
      %v2018 = vsel %vm638, %v2016, %v2017
      %s2019 = scalar_lea.vmem %s1, 16
      %v2020 = vld [vmem:[%s2019] sm:$0x3]
      %v2021 = vunpack.c.l.b16 %v1966
      %v2022 = vunpack.c.l.b16 %v1969
      %v2023 = vunpack.c.l.b16 %v1973
      %v2024 = vunpack.c.l.b16 %v1976
      %v2025 = vunpack.c.l.b16 %v1980
      %v2026 = vunpack.c.l.b16 %v1983
      %v2027 = vunpack.c.l.b16 %v1987
      %v2028 = vunpack.c.l.b16 %v1990
      %v2029 = vunpack.c.l.b16 %v1994
      %v2030 = vunpack.c.l.b16 %v1997
      %v2031 = vunpack.c.l.b16 %v2001
      %v2032 = vunpack.c.l.b16 %v2004
      %v2033 = vunpack.c.l.b16 %v2008
      %v2034 = vunpack.c.l.b16 %v2011
      %v2035 = vunpack.c.l.b16 %v2015
      %v2036 = vunpack.c.l.b16 %v2018
      %v2037 = vpack.c.b16 %v2022, %v2021
      %v2038 = vpack.c.b16 %v2024, %v2023
      %v2039 = vpack.c.b16 %v2026, %v2025
      %v2040 = vpack.c.b16 %v2028, %v2027
      %v2041 = vpack.c.b16 %v2030, %v2029
      %v2042 = vpack.c.b16 %v2032, %v2031
      %v2043 = vpack.c.b16 %v2034, %v2033
      %v2044 = vpack.c.b16 %v2036, %v2035
      %v2046 = vsel %vm362, %v2037, 0
      %v2049 = vsel %vm362, %v2038, 0
      %v2052 = vsel %vm362, %v2039, 0
      %v2055 = vsel %vm362, %v2040, 0
      %v2058 = vsel %vm362, %v2041, 0
      %v2061 = vsel %vm362, %v2042, 0
      %v2064 = vsel %vm362, %v2043, 0
      %v2067 = vsel %vm362, %v2044, 0
      %v2070 = vsel %vm387, %v2020, 0
      %2072 = vmatprep.subr.bf16.mxu0 0
      %2073 = vmatpush1.bf16.msra.mxu0 %v2070
      %2074 = vmatprep.subr.bf16.mxu0 0
      %2075 = vmatpush1.bf16.msra.mxu0 0
      %2076 = vmatprep.subr.bf16.mxu0 0
      %2077 = vmatpush1.bf16.msra.mxu0 0
      %2078 = vmatprep.subr.bf16.mxu0 0
      %2079 = vmatpush1.bf16.msra.mxu0 0
      %2080 = vmatprep.subr.bf16.mxu0 0
      %2081 = vmatpush1.bf16.msra.mxu0 0
      %2082 = vmatprep.subr.bf16.mxu0 0
      %2083 = vmatpush1.bf16.msra.mxu0 0
      %2084 = vmatprep.subr.bf16.mxu0 0
      %2085 = vmatpush1.bf16.msra.mxu0 0
      %2086 = vmatprep.subr.bf16.mxu0 0
      %2087 = vmatpush1.bf16.msra.mxu0 0
      %2088 = vmatprep.subr.bf16.mxu0 0
      %2089 = vmatpush1.bf16.msra.mxu0 0
      %2090 = vmatprep.subr.bf16.mxu0 0
      %2091 = vmatpush1.bf16.msra.mxu0 0
      %2092 = vmatprep.subr.bf16.mxu0 0
      %2093 = vmatpush1.bf16.msra.mxu0 0
      %2094 = vmatprep.subr.bf16.mxu0 0
      %2095 = vmatpush1.bf16.msra.mxu0 0
      %2096 = vmatprep.subr.bf16.mxu0 0
      %2097 = vmatpush1.bf16.msra.mxu0 0
      %2098 = vmatprep.subr.bf16.mxu0 0
      %2099 = vmatpush1.bf16.msra.mxu0 0
      %2100 = vmatprep.subr.bf16.mxu0 0
      %2101 = vmatpush1.bf16.msra.mxu0 0
      %2102 = vmatprep.subr.bf16.mxu0 0
      %2103 = vmatpush1.bf16.msra.mxu0 0
      %2104 = vmatprep.mubr.bf16.mxu0 0
      %2105 = vmatmul.mubr.bf16.gmra.mrb[0].mxu0 %v2046
      %v2106 = vpop.f32.mrb[0].mxu0
      %v2107 = vadd.f32 0.0, %v2106
      %v2108 = vpop.f32.mrb[0].mxu0
      %v2109 = vpop.f32.mrb[0].mxu0
      %v2110 = vadd.f32 0.0, %v2109
      %v2111 = vpop.f32.mrb[0].mxu0
      %2112 = vmatprep.mubr.bf16.mxu0 0
      %2113 = vmatmul.mubr.bf16.gmra.mrb[0].mxu0 %v2049
      %v2114 = vpop.f32.mrb[0].mxu0
      %v2115 = vadd.f32 0.0, %v2114
      %v2116 = vpop.f32.mrb[0].mxu0
      %v2117 = vpop.f32.mrb[0].mxu0
      %v2118 = vadd.f32 0.0, %v2117
      %v2119 = vpop.f32.mrb[0].mxu0
      %2120 = vmatprep.mubr.bf16.mxu0 0
      %2121 = vmatmul.mubr.bf16.gmra.mrb[0].mxu0 %v2052
      %v2122 = vpop.f32.mrb[0].mxu0
      %v2123 = vadd.f32 0.0, %v2122
      %v2124 = vpop.f32.mrb[0].mxu0
      %v2125 = vpop.f32.mrb[0].mxu0
      %v2126 = vadd.f32 0.0, %v2125
      %v2127 = vpop.f32.mrb[0].mxu0
      %2128 = vmatprep.mubr.bf16.mxu0 0
      %2129 = vmatmul.mubr.bf16.gmra.mrb[0].mxu0 %v2055
      %v2130 = vpop.f32.mrb[0].mxu0
      %v2131 = vadd.f32 0.0, %v2130
      %v2132 = vpop.f32.mrb[0].mxu0
      %v2133 = vpop.f32.mrb[0].mxu0
      %v2134 = vadd.f32 0.0, %v2133
      %v2135 = vpop.f32.mrb[0].mxu0
      %2136 = vmatprep.mubr.bf16.mxu0 0
      %2137 = vmatmul.mubr.bf16.gmra.mrb[0].mxu0 %v2058
      %v2138 = vpop.f32.mrb[0].mxu0
      %v2139 = vadd.f32 0.0, %v2138
      %v2140 = vpop.f32.mrb[0].mxu0
      %v2141 = vpop.f32.mrb[0].mxu0
      %v2142 = vadd.f32 0.0, %v2141
      %v2143 = vpop.f32.mrb[0].mxu0
      %2144 = vmatprep.mubr.bf16.mxu0 0
      %2145 = vmatmul.mubr.bf16.gmra.mrb[0].mxu0 %v2061
      %v2146 = vpop.f32.mrb[0].mxu0
      %v2147 = vadd.f32 0.0, %v2146
      %v2148 = vpop.f32.mrb[0].mxu0
      %v2149 = vpop.f32.mrb[0].mxu0
      %v2150 = vadd.f32 0.0, %v2149
      %v2151 = vpop.f32.mrb[0].mxu0
      %2152 = vmatprep.mubr.bf16.mxu0 0
      %2153 = vmatmul.mubr.bf16.gmra.mrb[0].mxu0 %v2064
      %v2154 = vpop.f32.mrb[0].mxu0
      %v2155 = vadd.f32 0.0, %v2154
      %v2156 = vpop.f32.mrb[0].mxu0
      %v2157 = vpop.f32.mrb[0].mxu0
      %v2158 = vadd.f32 0.0, %v2157
      %v2159 = vpop.f32.mrb[0].mxu0
      %2160 = vmatprep.mubr.bf16.mxu0 0
      %2161 = vmatmul.mubr.bf16.gmra.mrb[0].mxu0 %v2067
      %v2162 = vpop.f32.mrb[0].mxu0
      %v2163 = vadd.f32 0.0, %v2162
      %v2164 = vpop.f32.mrb[0].mxu0
      %v2165 = vpop.f32.mrb[0].mxu0
      %v2166 = vadd.f32 0.0, %v2165
      %v2167 = vpop.f32.mrb[0].mxu0
      %2168 = vdwg.mxu0
      %v2169 = vadd.f32 %v1947, %v2107
      %v2170 = vadd.f32 %v1948, %v2110
      %v2171 = vadd.f32 %v1949, %v2115
      %v2172 = vadd.f32 %v1950, %v2118
      %v2173 = vadd.f32 %v1951, %v2123
      %v2174 = vadd.f32 %v1952, %v2126
      %v2175 = vadd.f32 %v1953, %v2131
      %v2176 = vadd.f32 %v1954, %v2134
      %v2177 = vadd.f32 %v1955, %v2139
      %v2178 = vadd.f32 %v1956, %v2142
      %v2179 = vadd.f32 %v1957, %v2147
      %v2180 = vadd.f32 %v1958, %v2150
      %v2181 = vadd.f32 %v1959, %v2155
      %v2182 = vadd.f32 %v1960, %v2158
      %v2183 = vadd.f32 %v1961, %v2163
      %v2184 = vadd.f32 %v1962, %v2166
      %v2185 = vld [vmem:[%s2] sm:$0x1]
      %v2187 = vlaneseq
      %v2188 = vshrl.u32 %v2187, 7
      %v2189 = vsub.s32 0, %v2188
      %v2190 = vrot.slane %v2185, %v2189
      %v2192 = vmul.f32 %v2169, %v2190
      %v2193 = vmul.f32 %v2170, %v2190
      %v2194 = vmul.f32 %v2171, %v2190
      %v2195 = vmul.f32 %v2172, %v2190
      %v2196 = vmul.f32 %v2173, %v2190
      %v2197 = vmul.f32 %v2174, %v2190
      %v2198 = vmul.f32 %v2175, %v2190
      %v2199 = vmul.f32 %v2176, %v2190
      %v2200 = vmul.f32 %v2177, %v2190
      %v2201 = vmul.f32 %v2178, %v2190
      %v2202 = vmul.f32 %v2179, %v2190
      %v2203 = vmul.f32 %v2180, %v2190
      %v2204 = vmul.f32 %v2181, %v2190
      %v2205 = vmul.f32 %v2182, %v2190
      %v2206 = vmul.f32 %v2183, %v2190
      %v2207 = vmul.f32 %v2184, %v2190
      %v2208 = vld [vmem:[%s3] sm:$0x1]
      %v2210 = vlaneseq
      %v2211 = vshrl.u32 %v2210, 7
      %v2212 = vsub.s32 0, %v2211
      %v2213 = vrot.slane %v2208, %v2212
      %v2215 = vadd.f32 %v2192, %v2213
      %v2216 = vadd.f32 %v2193, %v2213
      %v2217 = vadd.f32 %v2194, %v2213
      %v2218 = vadd.f32 %v2195, %v2213
      %v2219 = vadd.f32 %v2196, %v2213
      %v2220 = vadd.f32 %v2197, %v2213
      %v2221 = vadd.f32 %v2198, %v2213
      %v2222 = vadd.f32 %v2199, %v2213
      %v2223 = vadd.f32 %v2200, %v2213
      %v2224 = vadd.f32 %v2201, %v2213
      %v2225 = vadd.f32 %v2202, %v2213
      %v2226 = vadd.f32 %v2203, %v2213
      %v2227 = vadd.f32 %v2204, %v2213
      %v2228 = vadd.f32 %v2205, %v2213
      %v2229 = vadd.f32 %v2206, %v2213
      %v2230 = vadd.f32 %v2207, %v2213
      %v2231 = vmax.f32 %v2215, 0.0
      %v2232 = vmax.f32 %v2216, 0.0
      %v2233 = vmax.f32 %v2217, 0.0
      %v2234 = vmax.f32 %v2218, 0.0
      %v2235 = vmax.f32 %v2219, 0.0
      %v2236 = vmax.f32 %v2220, 0.0
      %v2237 = vmax.f32 %v2221, 0.0
      %v2238 = vmax.f32 %v2222, 0.0
      %v2239 = vmax.f32 %v2223, 0.0
      %v2240 = vmax.f32 %v2224, 0.0
      %v2241 = vmax.f32 %v2225, 0.0
      %v2242 = vmax.f32 %v2226, 0.0
      %v2243 = vmax.f32 %v2227, 0.0
      %v2244 = vmax.f32 %v2228, 0.0
      %v2245 = vmax.f32 %v2229, 0.0
      %v2246 = vmax.f32 %v2230, 0.0
      %2247 = vst [vmem:[%s221] sm:$0xff] %v2231
      %2248 = vst [vmem:[%s221 + $0x8] sm:$0xff] %v2232
      %2249 = vst [vmem:[%s221 + $0x10] sm:$0xff] %v2233
      %2250 = vst [vmem:[%s221 + $0x18] sm:$0xff] %v2234
      %2251 = vst [vmem:[%s221 + $0x20] sm:$0xff] %v2235
      %2252 = vst [vmem:[%s221 + $0x28] sm:$0xff] %v2236
      %2253 = vst [vmem:[%s221 + $0x30] sm:$0xff] %v2237
      %2254 = vst [vmem:[%s221 + $0x38] sm:$0xff] %v2238
      %2255 = vst [vmem:[%s221 + $0x40] sm:$0xff] %v2239
      %2256 = vst [vmem:[%s221 + $0x48] sm:$0xff] %v2240
      %2257 = vst [vmem:[%s221 + $0x50] sm:$0xff] %v2241
      %2258 = vst [vmem:[%s221 + $0x58] sm:$0xff] %v2242
      %2259 = vst [vmem:[%s221 + $0x60] sm:$0xff] %v2243
      %2260 = vst [vmem:[%s221 + $0x68] sm:$0xff] %v2244
      %2261 = vst [vmem:[%s221 + $0x70] sm:$0xff] %v2245
      %2262 = vst [vmem:[%s221 + $0x78] sm:$0xff] %v2246
      %s2263 = smul.u32 8, %s20
      %p2264 = scmp.lt.s32.totalorder %s19, 1
      %s2265 = scalar_select %p2264, %s19, 1
      %p2266 = scmp.lt.s32.totalorder %s2263, 15
      %s2267 = scalar_select %p2266, %s2263, 15
      %s2268 = smul.addr %s2267, 2
      %s2269 = smul.addr %s2265, 32
      %s2270 = sadd.s32 %s2268, %s2269
      %s2271 = smul.addr %s2270, 8
      %s2272 = scalar_lea.vmem %s4, %s2271
      // Predicated region
      $region37: #{aspp_module_forward.1} parent=35 // pred_check
        %p2273 = pneg %p136
      $region38: #{aspp_module_forward.1} parent=35 // pred_check_branch
        %2275 = sbr.rel (%p2273) target = $region40
      $region39: #{aspp_module_forward.1} parent=35 // pred_region
        %s2276 = smul.u32 8, %s20
      $region40: #{aspp_module_forward.1} parent=35 // pred_fallthru
        _
    $region36: #{aspp_module_forward.1} parent=5 // pred_fallthru
      _
    %p2277 = scmp.le.s32.totalorder 2, %s10
    // Predicated region
    $region41: #{aspp_module_forward.1} parent=5 // pred_check
      %p2278 = pneg %p2277
    $region42: #{aspp_module_forward.1} parent=5 // pred_check_branch
      %2280 = sbr.rel (%p2278) target = $region44
    $region43: #{aspp_module_forward.1} parent=5 // pred_region
      %s2281 = ssub.s32 %s10, 2
      // Predicated region
      $region45: #{aspp_module_forward.1} parent=43 // pred_check
        %p2282 = pneg %p142
      $region46: #{aspp_module_forward.1} parent=43 // pred_check_branch
        %2284 = sbr.rel (%p2282) target = $region48
      $region47: #{aspp_module_forward.1} parent=43 // pred_region
        %s2285 = smul.u32 8, %s22
        %p2286 = scmp.lt.s32.totalorder %s21, 1
        %s2287 = scalar_select %p2286, %s21, 1
        %p2288 = scmp.lt.s32.totalorder %s2285, 15
        %s2289 = scalar_select %p2288, %s2285, 15
        %s2290 = smul.addr %s2289, 2
        %s2291 = smul.addr %s2287, 32
        %s2292 = sadd.s32 %s2290, %s2291
        %s2293 = smul.addr %s2292, 8
        %s2294 = scalar_lea.vmem %s4, %s2293
      $region48: #{aspp_module_forward.1} parent=43 // pred_fallthru
        _
    $region44: #{aspp_module_forward.1} parent=5 // pred_fallthru
      _
  $region6: #{aspp_module_forward.1} parent=0 // loop_footer
    %s14 = sadd.s32 1, %s10
  $region7: #{aspp_module_forward.1} parent=0 // loop_footer_branch
    %9 = sbr.rel target = $region3
  $region8: #{aspp_module_forward.1} parent=0 // loop_exit
    _

</llo_original>
